<compile_context>
chip_gen: v7x
topology: tpu7x:2x2x1
jax: 0.10.0
libtpu: 0.0.40
codegen_flags: <defaults>
</compile_context>

<pallas_src>
from functools import partial

import jax
import jax.numpy as jnp
import numpy as np
from jax.experimental import pallas as pl
from jax.experimental.pallas import tpu as pltpu

_NEG_PAD = -1e30  # keyword-bias pad value; exp(pad - max) underflows to exactly 0


def _round_up(n, m):
    return ((n + m - 1) // m) * m


# ----------------------------- kernel ---------------------------------------

def lstm_kws_kernel(x_ref, wih1_ref, wtop_ref, whh2_ref, b1_ref, b2_ref,
                    wout_ref, bout_ref, out_ref, xproj_ref, hs_ref):
    """Whole forward pass in a single invocation.

    x_ref    : (T*Bp, D)   bf16  time-major input, batch padded to Bp=8 sublanes
    wih1_ref : (D, G)      bf16  layer-1 input weights, gate axis padded to G
    wtop_ref : (H, 2G)     bf16  fused [whh1 | wih2]
    whh2_ref : (H, G)      bf16  layer-2 recurrent weights
    b1_ref   : (1, G)      f32   b_ih1 + b_hh1
    b2_ref   : (1, G)      f32   b_ih2 + b_hh2
    wout_ref : (H, Kp)     bf16  head weights (cols >= K are zero)
    bout_ref : (1, Kp)     f32   head bias (lanes >= K hold -1e30)
    out_ref  : (Bp, Kp)    f32   mean-over-time log_softmax (pad rows/lanes junk)
    xproj_ref: (T*Bp, G)   f32   scratch: hoisted layer-1 input projection
    hs_ref   : (T*Bp, H)   f32   scratch: layer-2 hidden states for the head
    """
    Bp, Kp = out_ref.shape
    TB, G = xproj_ref.shape
    T = TB // Bp
    H = hs_ref.shape[1]
    bf16 = jnp.bfloat16

    # ---- prologue: layer-1 input projection hoisted out of the recurrence ----
    xproj_ref[...] = (jnp.dot(x_ref[...], wih1_ref[...],
                              preferred_element_type=jnp.float32)
                      + b1_ref[...])                              # (T*Bp, G)

    w_top = wtop_ref[...]                                         # (H, 2G) bf16
    whh2 = whh2_ref[...]                                          # (H, G)  bf16
    b2 = jnp.broadcast_to(b2_ref[...], (Bp, G))                   # hoisted bcast

    def cell(gates, c):
        # PyTorch LSTM gate order: i, f, g, o.  Static H-lane slices; all
        # element-wise / transcendental math stays in f32.
        i = jax.nn.sigmoid(gates[:, 0 * H:1 * H])
        f = jax.nn.sigmoid(gates[:, 1 * H:2 * H])
        g = jnp.tanh(gates[:, 2 * H:3 * H])
        o = jax.nn.sigmoid(gates[:, 3 * H:4 * H])
        c_new = f * c + i * g
        h_new = o * jnp.tanh(c_new)
        return h_new, c_new

    zeros_h = jnp.zeros((Bp, H), jnp.float32)
    c1, c2, h2 = zeros_h, zeros_h, zeros_h
    rec1 = None   # h1(t-1) @ whh1, produced by the previous step's fused push

    # T is a small static constant -> fully unrolled at trace time.
    # TODO(synk): for long sequences switch this to lax.fori_loop(unroll=4-8)
    # over a (T, Bp, .) view to bound vreg live ranges and compile time.
    for t in range(T):
        # Layer 1: only an add + cell on the serial path; the recurrent dot
        # was produced by the previous step's fused MXU push.
        xg = xproj_ref[t * Bp:(t + 1) * Bp, :]          # 8-sublane-aligned slab
        g1 = xg if rec1 is None else xg + rec1
        h1, c1 = cell(g1, c1)

        # One fused push: [h1@whh1 (rec term for t+1) | h1@wih2 (layer-2 input)]
        f12 = jnp.dot(h1.astype(bf16), w_top, preferred_element_type=jnp.float32)
        rec1 = f12[:, :G]

        g2 = f12[:, G:] + b2
        if t > 0:                                        # h2 == 0 at t == 0
            g2 = g2 + jnp.dot(h2.astype(bf16), whh2,
                              preferred_element_type=jnp.float32)
        h2, c2 = cell(g2, c2)

        hs_ref[t * Bp:(t + 1) * Bp, :] = h2              # aligned slab store

    # ---- epilogue: head + log_softmax + mean over T, batched over all steps ----
    logits = (jnp.dot(hs_ref[...].astype(bf16), wout_ref[...],
                      preferred_element_type=jnp.float32)
              + bout_ref[...])                                    # (T*Bp, Kp)
    m = jnp.max(logits, axis=-1, keepdims=True)
    lse = m + jnp.log(jnp.sum(jnp.exp(logits - m), axis=-1, keepdims=True))
    logp = logits - lse

    # Mean over time with a selection matmul (rows are t-major, b-minor).
    # Kept in f32 so the final result is not re-rounded.
    rows = jax.lax.broadcasted_iota(jnp.int32, (Bp, TB), 1)
    bidx = jax.lax.broadcasted_iota(jnp.int32, (Bp, TB), 0)
    sel = jnp.where(rows % Bp == bidx, 1.0 / T, 0.0).astype(jnp.float32)
    out_ref[...] = jnp.dot(sel, logp, preferred_element_type=jnp.float32)


# ----------------------------- weight preparation ----------------------------

def prepare_params(params, compute_dtype=jnp.bfloat16):
    """Pad + cast ONCE, outside the per-call hot path.

    The concatenated 4H gate axis is padded to G = round_up(4H, 128) (no
    padding when 4H is already a multiple of 128, e.g. H=32).  Matmul weights
    are stored in bf16; biases stay f32 (added after the f32-accumulating dots).
    """
    H = params["whh1"].shape[0]
    K = params["wout"].shape[1]
    G = _round_up(4 * H, 128)
    Kp = _round_up(K, 128)

    def padg(w):                                       # (R, 4H) -> (R, G)
        return jnp.pad(w, ((0, 0), (0, G - 4 * H)))

    wih1 = padg(params["wih1"]).astype(compute_dtype)                  # (D, G)
    # Fused weight: one push with h1(t) yields [h1@whh1 | h1@wih2].
    w_top = jnp.concatenate([padg(params["whh1"]), padg(params["wih2"])],
                            axis=1).astype(compute_dtype)              # (H, 2G)
    whh2 = padg(params["whh2"]).astype(compute_dtype)                  # (H, G)
    b1 = padg(params["b1"]).astype(jnp.float32)                        # (1, G)
    b2 = padg(params["b2"]).astype(jnp.float32)                        # (1, G)
    wout = jnp.pad(params["wout"], ((0, 0), (0, Kp - K))).astype(compute_dtype)
    bout = jnp.pad(params["bout"], ((0, 0), (0, Kp - K)),
                   constant_values=_NEG_PAD).astype(jnp.float32)       # (1, Kp)
    return dict(wih1=wih1, w_top=w_top, whh2=whh2, b1=b1, b2=b2,
                wout=wout, bout=bout)


# ----------------------------- wrapper ---------------------------------------

@partial(jax.jit, static_argnames=("num_keywords",))
def lstm_keyword_spotter(x, p, *, num_keywords):
    """x: (T, B, D) float32.  p: output of prepare_params().  Hidden state
    starts at zero (module's init_hidden(), as in its training/eval loops)."""
    T, B, D = x.shape
    H, G = p["whh2"].shape
    Kp = p["wout"].shape[1]
    Bp = _round_up(B, 8)            # sublane-align every per-step slab

    xpad = jnp.pad(x, ((0, 0), (0, Bp - B), (0, 0)))     # (T, Bp, D)
    x2 = xpad.reshape(T * Bp, D).astype(jnp.bfloat16)    # layout plumbing

    # Explicit VMEM budget (weights + activations + scratches), generous margin.
    bf, f4 = 2, 4
    need = (T * Bp * D * bf + D * G * bf + H * 2 * G * bf + H * G * bf
            + 2 * G * f4 + H * Kp * bf + Kp * f4 + Bp * Kp * f4
            + T * Bp * G * f4 + T * Bp * H * f4)
    vmem_limit = int(min(max(4 * need, 16 * 1024 * 1024), 64 * 1024 * 1024))
    # TODO(synk): for production T/B, tile the prologue xproj and epilogue head
    # over T (pltpu.emit_pipeline) instead of keeping full-length scratches
    # resident (v7x has only 64 MiB physical VMEM).
    # TODO(synk): for large batch, add a leading batch grid axis marked
    # "parallel" in dimension_semantics so both v7x TensorCores are used.

    out_p = pl.pallas_call(
        lstm_kws_kernel,
        out_shape=jax.ShapeDtypeStruct((Bp, Kp), jnp.float32),
        in_specs=[pl.BlockSpec(memory_space=pltpu.MemorySpace.VMEM)
                  for _ in range(8)],
        out_specs=pl.BlockSpec(memory_space=pltpu.MemorySpace.VMEM),
        scratch_shapes=[pltpu.VMEM((T * Bp, G), jnp.float32),   # xproj
                        pltpu.VMEM((T * Bp, H), jnp.float32)],  # h2 stack
        compiler_params=pltpu.CompilerParams(vmem_limit_bytes=vmem_limit),
    )(x2, p["wih1"], p["w_top"], p["whh2"], p["b1"], p["b2"],
      p["wout"], p["bout"])

    return out_p[:B, :num_keywords]


# ----------------------------- pure-JAX reference ----------------------------

def ref_forward(x, params):
    T, B, D = x.shape
    H = params["whh1"].shape[0]

    def make_cell(wih, whh, b):
        def cell(carry, x_t):
            h, c = carry
            gates = x_t @ wih + h @ whh + b
            i = jax.nn.sigmoid(gates[:, 0 * H:1 * H])
            f = jax.nn.sigmoid(gates[:, 1 * H:2 * H])
            g = jnp.tanh(gates[:, 2 * H:3 * H])
            o = jax.nn.sigmoid(gates[:, 3 * H:4 * H])
            c_new = f * c + i * g
            h_new = o * jnp.tanh(c_new)
            return (h_new, c_new), h_new
        return cell

    zeros = (jnp.zeros((B, H), jnp.float32), jnp.zeros((B, H), jnp.float32))
    _, out1 = jax.lax.scan(make_cell(params["wih1"], params["whh1"], params["b1"]),
                           zeros, x)
    _, out2 = jax.lax.scan(make_cell(params["wih2"], params["whh2"], params["b2"]),
                           zeros, out1)
    logits = out2 @ params["wout"] + params["bout"]           # (T, B, K)
    logp = jax.nn.log_softmax(logits, axis=2)
    return jnp.mean(logp, axis=0)                             # (B, K)


# ----------------------------- parameter init --------------------------------

def init_params(key, input_dim, hidden_dim, num_keywords):
    """Deterministic synthetic init mimicking PyTorch's U(-1/sqrt(H), 1/sqrt(H))."""
    H, D, K = hidden_dim, input_dim, num_keywords
    k = 1.0 / np.sqrt(H)
    keys = jax.random.split(key, 12)

    def u(kk, shape):
        return jax.random.uniform(kk, shape, jnp.float32, -k, k)

    # LSTM1: weight_ih (4H, D), weight_hh (4H, H), biases b_ih + b_hh (4H,)
    wih1 = u(keys[0], (4 * H, D)).T                 # -> (D, 4H)
    whh1 = u(keys[1], (4 * H, H)).T                 # -> (H, 4H)
    b1 = (u(keys[2], (4 * H,)) + u(keys[3], (4 * H,))).reshape(1, 4 * H)
    # LSTM2
    wih2 = u(keys[4], (4 * H, H)).T
    whh2 = u(keys[5], (4 * H, H)).T
    b2 = (u(keys[6], (4 * H,)) + u(keys[7], (4 * H,))).reshape(1, 4 * H)
    # Linear head: weight (K, H), bias (K,)
    wout = u(keys[8], (K, H)).T                     # -> (H, K)
    bout = u(keys[9], (K,)).reshape(1, K)

    return dict(wih1=wih1, whh1=whh1, b1=b1,
                wih2=wih2, whh2=whh2, b2=b2,
                wout=wout, bout=bout)


# ----------------------------- main -------------------------------------------

if __name__ == "__main__":
    # Small shapes consistent with the module's forward:
    #   input (T, B, D); LSTM hidden H; K keyword classes; output (B, K).
    T, B, D, H, K = 8, 2, 16, 32, 10

    key = jax.random.PRNGKey(0)
    kx, kp = jax.random.split(key)
    x = jax.random.normal(kx, (T, B, D), jnp.float32)
    params = init_params(kp, D, H, K)

    prepped = prepare_params(params)     # pad + bf16-cast once, off the hot path

    out = lstm_keyword_spotter(x, prepped, num_keywords=K)
    out = jax.block_until_ready(out)

    ref = jax.block_until_ready(ref_forward(x, params))
    # bf16 matmul operands (with f32 accumulation) vs. the pure-f32 reference:
    # the recurrence amplifies rounding over T, so the tolerance is relaxed
    # from the previous 1e-4 (review's correctness note).
    np.testing.assert_allclose(np.asarray(out), np.asarray(ref),
                               rtol=5e-2, atol=5e-2)

    print("KERNEL_OK")
</pallas_src>

<mosaic_0001>
module attributes {stable_mosaic.version = 11 : i64} {
  func.func @lstm_kws_kernel(%arg0: memref<64x16xbf16, #tpu.memory_space<vmem>>, %arg1: memref<16x128xbf16, #tpu.memory_space<vmem>>, %arg2: memref<32x256xbf16, #tpu.memory_space<vmem>>, %arg3: memref<32x128xbf16, #tpu.memory_space<vmem>>, %arg4: memref<1x128xf32, #tpu.memory_space<vmem>>, %arg5: memref<1x128xf32, #tpu.memory_space<vmem>>, %arg6: memref<32x128xbf16, #tpu.memory_space<vmem>>, %arg7: memref<1x128xf32, #tpu.memory_space<vmem>>, %arg8: memref<8x128xf32, #tpu.memory_space<vmem>>, %arg9: memref<64x128xf32, #tpu.memory_space<vmem>>, %arg10: memref<64x32xf32, #tpu.memory_space<vmem>>) attributes {dimension_semantics = [], scalar_prefetch = 0 : i64, scratch_operands = 2 : i64, tpu.core_type = #tpu.core_type<tc>} {
    %c0 = arith.constant 0 : index
    %c0_0 = arith.constant 0 : index
    %0 = vector.load %arg0[%c0, %c0_0] : memref<64x16xbf16, #tpu.memory_space<vmem>>, vector<64x16xbf16>
    %c0_1 = arith.constant 0 : index
    %c0_2 = arith.constant 0 : index
    %1 = vector.load %arg1[%c0_1, %c0_2] : memref<16x128xbf16, #tpu.memory_space<vmem>>, vector<16x128xbf16>
    %cst = arith.constant dense<0.000000e+00> : vector<64x128xf32>
    %2 = tpu.matmul %0, %1, %cst {dimension_numbers = #tpu.dot_dimension_numbers<[1], [0], [0], [1], [0, 0, 1, 1], [], []>} : vector<64x16xbf16>, vector<16x128xbf16>, vector<64x128xf32> -> vector<64x128xf32>
    %c0_3 = arith.constant 0 : index
    %c0_4 = arith.constant 0 : index
    %3 = vector.load %arg4[%c0_3, %c0_4] : memref<1x128xf32, #tpu.memory_space<vmem>>, vector<1x128xf32>
    %4 = vector.broadcast %3 : vector<1x128xf32> to vector<64x128xf32>
    %5 = arith.addf %2, %4 : vector<64x128xf32>
    %c0_5 = arith.constant 0 : index
    %c0_6 = arith.constant 0 : index
    %6 = vector.load %arg9[%c0_5, %c0_6] : memref<64x128xf32, #tpu.memory_space<vmem>>, vector<64x128xf32>
    tpu.vector_store %arg9[%c0_5, %c0_6], %5 {strides = array<i32>} : memref<64x128xf32, #tpu.memory_space<vmem>>, vector<64x128xf32>,
    %c0_7 = arith.constant 0 : index
    %c0_8 = arith.constant 0 : index
    %7 = vector.load %arg2[%c0_7, %c0_8] : memref<32x256xbf16, #tpu.memory_space<vmem>>, vector<32x256xbf16>
    %c0_9 = arith.constant 0 : index
    %c0_10 = arith.constant 0 : index
    %8 = vector.load %arg3[%c0_9, %c0_10] : memref<32x128xbf16, #tpu.memory_space<vmem>>, vector<32x128xbf16>
    %c0_11 = arith.constant 0 : index
    %c0_12 = arith.constant 0 : index
    %9 = vector.load %arg5[%c0_11, %c0_12] : memref<1x128xf32, #tpu.memory_space<vmem>>, vector<1x128xf32>
    %10 = vector.shape_cast %9 : vector<1x128xf32> to vector<1x128xf32>
    %11 = vector.broadcast %10 : vector<1x128xf32> to vector<8x128xf32>
    %cst_13 = arith.constant 0.000000e+00 : f32
    %12 = vector.broadcast %cst_13 : f32 to vector<8x32xf32>
    %c0_14 = arith.constant 0 : index
    %c0_15 = arith.constant 0 : index
    %13 = vector.load %arg9[%c0_14, %c0_15] : memref<64x128xf32, #tpu.memory_space<vmem>>, vector<8x128xf32>
    %14 = vector.extract_strided_slice %13 {offsets = [0, 0], sizes = [8, 32], strides = [1, 1]} : vector<8x128xf32> to vector<8x32xf32>
    %15 = arith.negf %14 : vector<8x32xf32>
    %16 = math.exp %15 : vector<8x32xf32>
    %cst_16 = arith.constant 1.000000e+00 : f32
    %17 = vector.broadcast %cst_16 : f32 to vector<8x32xf32>
    %18 = arith.addf %17, %16 : vector<8x32xf32>
    %19 = arith.divf %17, %18 : vector<8x32xf32>
    %20 = vector.extract_strided_slice %13 {offsets = [0, 32], sizes = [8, 32], strides = [1, 1]} : vector<8x128xf32> to vector<8x32xf32>
    %21 = arith.negf %20 : vector<8x32xf32>
    %22 = math.exp %21 : vector<8x32xf32>
    %cst_17 = arith.constant 1.000000e+00 : f32
    %23 = vector.broadcast %cst_17 : f32 to vector<8x32xf32>
    %24 = arith.addf %23, %22 : vector<8x32xf32>
    %25 = arith.divf %23, %24 : vector<8x32xf32>
    %26 = vector.extract_strided_slice %13 {offsets = [0, 64], sizes = [8, 32], strides = [1, 1]} : vector<8x128xf32> to vector<8x32xf32>
    %27 = math.tanh %26 : vector<8x32xf32>
    %28 = vector.extract_strided_slice %13 {offsets = [0, 96], sizes = [8, 32], strides = [1, 1]} : vector<8x128xf32> to vector<8x32xf32>
    %29 = arith.negf %28 : vector<8x32xf32>
    %30 = math.exp %29 : vector<8x32xf32>
    %cst_18 = arith.constant 1.000000e+00 : f32
    %31 = vector.broadcast %cst_18 : f32 to vector<8x32xf32>
    %32 = arith.addf %31, %30 : vector<8x32xf32>
    %33 = arith.divf %31, %32 : vector<8x32xf32>
    %34 = arith.mulf %25, %12 : vector<8x32xf32>
    %35 = arith.mulf %19, %27 : vector<8x32xf32>
    %36 = arith.addf %34, %35 : vector<8x32xf32>
    %37 = math.tanh %36 : vector<8x32xf32>
    %38 = arith.mulf %33, %37 : vector<8x32xf32>
    %39 = arith.truncf %38 : vector<8x32xf32> to vector<8x32xbf16>
    %cst_19 = arith.constant dense<0.000000e+00> : vector<8x256xf32>
    %40 = tpu.matmul %39, %7, %cst_19 {dimension_numbers = #tpu.dot_dimension_numbers<[1], [0], [0], [1], [0, 0, 1, 1], [], []>} : vector<8x32xbf16>, vector<32x256xbf16>, vector<8x256xf32> -> vector<8x256xf32>
    %41 = vector.extract_strided_slice %40 {offsets = [0, 0], sizes = [8, 128], strides = [1, 1]} : vector<8x256xf32> to vector<8x128xf32>
    %42 = vector.extract_strided_slice %40 {offsets = [0, 128], sizes = [8, 128], strides = [1, 1]} : vector<8x256xf32> to vector<8x128xf32>
    %43 = arith.addf %42, %11 : vector<8x128xf32>
    %44 = vector.extract_strided_slice %43 {offsets = [0, 0], sizes = [8, 32], strides = [1, 1]} : vector<8x128xf32> to vector<8x32xf32>
    %45 = arith.negf %44 : vector<8x32xf32>
    %46 = math.exp %45 : vector<8x32xf32>
    %cst_20 = arith.constant 1.000000e+00 : f32
    %47 = vector.broadcast %cst_20 : f32 to vector<8x32xf32>
    %48 = arith.addf %47, %46 : vector<8x32xf32>
    %49 = arith.divf %47, %48 : vector<8x32xf32>
    %50 = vector.extract_strided_slice %43 {offsets = [0, 32], sizes = [8, 32], strides = [1, 1]} : vector<8x128xf32> to vector<8x32xf32>
    %51 = arith.negf %50 : vector<8x32xf32>
    %52 = math.exp %51 : vector<8x32xf32>
    %cst_21 = arith.constant 1.000000e+00 : f32
    %53 = vector.broadcast %cst_21 : f32 to vector<8x32xf32>
    %54 = arith.addf %53, %52 : vector<8x32xf32>
    %55 = arith.divf %53, %54 : vector<8x32xf32>
    %56 = vector.extract_strided_slice %43 {offsets = [0, 64], sizes = [8, 32], strides = [1, 1]} : vector<8x128xf32> to vector<8x32xf32>
    %57 = math.tanh %56 : vector<8x32xf32>
    %58 = vector.extract_strided_slice %43 {offsets = [0, 96], sizes = [8, 32], strides = [1, 1]} : vector<8x128xf32> to vector<8x32xf32>
    %59 = arith.negf %58 : vector<8x32xf32>
    %60 = math.exp %59 : vector<8x32xf32>
    %cst_22 = arith.constant 1.000000e+00 : f32
    %61 = vector.broadcast %cst_22 : f32 to vector<8x32xf32>
    %62 = arith.addf %61, %60 : vector<8x32xf32>
    %63 = arith.divf %61, %62 : vector<8x32xf32>
    %64 = arith.mulf %55, %12 : vector<8x32xf32>
    %65 = arith.mulf %49, %57 : vector<8x32xf32>
    %66 = arith.addf %64, %65 : vector<8x32xf32>
    %67 = math.tanh %66 : vector<8x32xf32>
    %68 = arith.mulf %63, %67 : vector<8x32xf32>
    %c0_23 = arith.constant 0 : index
    %c0_24 = arith.constant 0 : index
    %69 = vector.load %arg10[%c0_23, %c0_24] : memref<64x32xf32, #tpu.memory_space<vmem>>, vector<8x32xf32>
    tpu.vector_store %arg10[%c0_23, %c0_24], %68 {strides = array<i32>} : memref<64x32xf32, #tpu.memory_space<vmem>>, vector<8x32xf32>,
    %c8 = arith.constant 8 : index
    %c0_25 = arith.constant 0 : index
    %70 = vector.load %arg9[%c8, %c0_25] : memref<64x128xf32, #tpu.memory_space<vmem>>, vector<8x128xf32>
    %71 = arith.addf %70, %41 : vector<8x128xf32>
    %72 = vector.extract_strided_slice %71 {offsets = [0, 0], sizes = [8, 32], strides = [1, 1]} : vector<8x128xf32> to vector<8x32xf32>
    %73 = arith.negf %72 : vector<8x32xf32>
    %74 = math.exp %73 : vector<8x32xf32>
    %cst_26 = arith.constant 1.000000e+00 : f32
    %75 = vector.broadcast %cst_26 : f32 to vector<8x32xf32>
    %76 = arith.addf %75, %74 : vector<8x32xf32>
    %77 = arith.divf %75, %76 : vector<8x32xf32>
    %78 = vector.extract_strided_slice %71 {offsets = [0, 32], sizes = [8, 32], strides = [1, 1]} : vector<8x128xf32> to vector<8x32xf32>
    %79 = arith.negf %78 : vector<8x32xf32>
    %80 = math.exp %79 : vector<8x32xf32>
    %cst_27 = arith.constant 1.000000e+00 : f32
    %81 = vector.broadcast %cst_27 : f32 to vector<8x32xf32>
    %82 = arith.addf %81, %80 : vector<8x32xf32>
    %83 = arith.divf %81, %82 : vector<8x32xf32>
    %84 = vector.extract_strided_slice %71 {offsets = [0, 64], sizes = [8, 32], strides = [1, 1]} : vector<8x128xf32> to vector<8x32xf32>
    %85 = math.tanh %84 : vector<8x32xf32>
    %86 = vector.extract_strided_slice %71 {offsets = [0, 96], sizes = [8, 32], strides = [1, 1]} : vector<8x128xf32> to vector<8x32xf32>
    %87 = arith.negf %86 : vector<8x32xf32>
    %88 = math.exp %87 : vector<8x32xf32>
    %cst_28 = arith.constant 1.000000e+00 : f32
    %89 = vector.broadcast %cst_28 : f32 to vector<8x32xf32>
    %90 = arith.addf %89, %88 : vector<8x32xf32>
    %91 = arith.divf %89, %90 : vector<8x32xf32>
    %92 = arith.mulf %83, %36 : vector<8x32xf32>
    %93 = arith.mulf %77, %85 : vector<8x32xf32>
    %94 = arith.addf %92, %93 : vector<8x32xf32>
    %95 = math.tanh %94 : vector<8x32xf32>
    %96 = arith.mulf %91, %95 : vector<8x32xf32>
    %97 = arith.truncf %96 : vector<8x32xf32> to vector<8x32xbf16>
    %cst_29 = arith.constant dense<0.000000e+00> : vector<8x256xf32>
    %98 = tpu.matmul %97, %7, %cst_29 {dimension_numbers = #tpu.dot_dimension_numbers<[1], [0], [0], [1], [0, 0, 1, 1], [], []>} : vector<8x32xbf16>, vector<32x256xbf16>, vector<8x256xf32> -> vector<8x256xf32>
    %99 = vector.extract_strided_slice %98 {offsets = [0, 0], sizes = [8, 128], strides = [1, 1]} : vector<8x256xf32> to vector<8x128xf32>
    %100 = vector.extract_strided_slice %98 {offsets = [0, 128], sizes = [8, 128], strides = [1, 1]} : vector<8x256xf32> to vector<8x128xf32>
    %101 = arith.addf %100, %11 : vector<8x128xf32>
    %102 = arith.truncf %68 : vector<8x32xf32> to vector<8x32xbf16>
    %cst_30 = arith.constant dense<0.000000e+00> : vector<8x128xf32>
    %103 = tpu.matmul %102, %8, %cst_30 {dimension_numbers = #tpu.dot_dimension_numbers<[1], [0], [0], [1], [0, 0, 1, 1], [], []>} : vector<8x32xbf16>, vector<32x128xbf16>, vector<8x128xf32> -> vector<8x128xf32>
    %104 = arith.addf %101, %103 : vector<8x128xf32>
    %105 = vector.extract_strided_slice %104 {offsets = [0, 0], sizes = [8, 32], strides = [1, 1]} : vector<8x128xf32> to vector<8x32xf32>
    %106 = arith.negf %105 : vector<8x32xf32>
    %107 = math.exp %106 : vector<8x32xf32>
    %cst_31 = arith.constant 1.000000e+00 : f32
    %108 = vector.broadcast %cst_31 : f32 to vector<8x32xf32>
    %109 = arith.addf %108, %107 : vector<8x32xf32>
    %110 = arith.divf %108, %109 : vector<8x32xf32>
    %111 = vector.extract_strided_slice %104 {offsets = [0, 32], sizes = [8, 32], strides = [1, 1]} : vector<8x128xf32> to vector<8x32xf32>
    %112 = arith.negf %111 : vector<8x32xf32>
    %113 = math.exp %112 : vector<8x32xf32>
    %cst_32 = arith.constant 1.000000e+00 : f32
    %114 = vector.broadcast %cst_32 : f32 to vector<8x32xf32>
    %115 = arith.addf %114, %113 : vector<8x32xf32>
    %116 = arith.divf %114, %115 : vector<8x32xf32>
    %117 = vector.extract_strided_slice %104 {offsets = [0, 64], sizes = [8, 32], strides = [1, 1]} : vector<8x128xf32> to vector<8x32xf32>
    %118 = math.tanh %117 : vector<8x32xf32>
    %119 = vector.extract_strided_slice %104 {offsets = [0, 96], sizes = [8, 32], strides = [1, 1]} : vector<8x128xf32> to vector<8x32xf32>
    %120 = arith.negf %119 : vector<8x32xf32>
    %121 = math.exp %120 : vector<8x32xf32>
    %cst_33 = arith.constant 1.000000e+00 : f32
    %122 = vector.broadcast %cst_33 : f32 to vector<8x32xf32>
    %123 = arith.addf %122, %121 : vector<8x32xf32>
    %124 = arith.divf %122, %123 : vector<8x32xf32>
    %125 = arith.mulf %116, %66 : vector<8x32xf32>
    %126 = arith.mulf %110, %118 : vector<8x32xf32>
    %127 = arith.addf %125, %126 : vector<8x32xf32>
    %128 = math.tanh %127 : vector<8x32xf32>
    %129 = arith.mulf %124, %128 : vector<8x32xf32>
    %c8_34 = arith.constant 8 : index
    %c0_35 = arith.constant 0 : index
    %130 = vector.load %arg10[%c8_34, %c0_35] : memref<64x32xf32, #tpu.memory_space<vmem>>, vector<8x32xf32>
    tpu.vector_store %arg10[%c8_34, %c0_35], %129 {strides = array<i32>} : memref<64x32xf32, #tpu.memory_space<vmem>>, vector<8x32xf32>,
    %c16 = arith.constant 16 : index
    %c0_36 = arith.constant 0 : index
    %131 = vector.load %arg9[%c16, %c0_36] : memref<64x128xf32, #tpu.memory_space<vmem>>, vector<8x128xf32>
    %132 = arith.addf %131, %99 : vector<8x128xf32>
    %133 = vector.extract_strided_slice %132 {offsets = [0, 0], sizes = [8, 32], strides = [1, 1]} : vector<8x128xf32> to vector<8x32xf32>
    %134 = arith.negf %133 : vector<8x32xf32>
    %135 = math.exp %134 : vector<8x32xf32>
    %cst_37 = arith.constant 1.000000e+00 : f32
    %136 = vector.broadcast %cst_37 : f32 to vector<8x32xf32>
    %137 = arith.addf %136, %135 : vector<8x32xf32>
    %138 = arith.divf %136, %137 : vector<8x32xf32>
    %139 = vector.extract_strided_slice %132 {offsets = [0, 32], sizes = [8, 32], strides = [1, 1]} : vector<8x128xf32> to vector<8x32xf32>
    %140 = arith.negf %139 : vector<8x32xf32>
    %141 = math.exp %140 : vector<8x32xf32>
    %cst_38 = arith.constant 1.000000e+00 : f32
    %142 = vector.broadcast %cst_38 : f32 to vector<8x32xf32>
    %143 = arith.addf %142, %141 : vector<8x32xf32>
    %144 = arith.divf %142, %143 : vector<8x32xf32>
    %145 = vector.extract_strided_slice %132 {offsets = [0, 64], sizes = [8, 32], strides = [1, 1]} : vector<8x128xf32> to vector<8x32xf32>
    %146 = math.tanh %145 : vector<8x32xf32>
    %147 = vector.extract_strided_slice %132 {offsets = [0, 96], sizes = [8, 32], strides = [1, 1]} : vector<8x128xf32> to vector<8x32xf32>
    %148 = arith.negf %147 : vector<8x32xf32>
    %149 = math.exp %148 : vector<8x32xf32>
    %cst_39 = arith.constant 1.000000e+00 : f32
    %150 = vector.broadcast %cst_39 : f32 to vector<8x32xf32>
    %151 = arith.addf %150, %149 : vector<8x32xf32>
    %152 = arith.divf %150, %151 : vector<8x32xf32>
    %153 = arith.mulf %144, %94 : vector<8x32xf32>
    %154 = arith.mulf %138, %146 : vector<8x32xf32>
    %155 = arith.addf %153, %154 : vector<8x32xf32>
    %156 = math.tanh %155 : vector<8x32xf32>
    %157 = arith.mulf %152, %156 : vector<8x32xf32>
    %158 = arith.truncf %157 : vector<8x32xf32> to vector<8x32xbf16>
    %cst_40 = arith.constant dense<0.000000e+00> : vector<8x256xf32>
    %159 = tpu.matmul %158, %7, %cst_40 {dimension_numbers = #tpu.dot_dimension_numbers<[1], [0], [0], [1], [0, 0, 1, 1], [], []>} : vector<8x32xbf16>, vector<32x256xbf16>, vector<8x256xf32> -> vector<8x256xf32>
    %160 = vector.extract_strided_slice %159 {offsets = [0, 0], sizes = [8, 128], strides = [1, 1]} : vector<8x256xf32> to vector<8x128xf32>
    %161 = vector.extract_strided_slice %159 {offsets = [0, 128], sizes = [8, 128], strides = [1, 1]} : vector<8x256xf32> to vector<8x128xf32>
    %162 = arith.addf %161, %11 : vector<8x128xf32>
    %163 = arith.truncf %129 : vector<8x32xf32> to vector<8x32xbf16>
    %cst_41 = arith.constant dense<0.000000e+00> : vector<8x128xf32>
    %164 = tpu.matmul %163, %8, %cst_41 {dimension_numbers = #tpu.dot_dimension_numbers<[1], [0], [0], [1], [0, 0, 1, 1], [], []>} : vector<8x32xbf16>, vector<32x128xbf16>, vector<8x128xf32> -> vector<8x128xf32>
    %165 = arith.addf %162, %164 : vector<8x128xf32>
    %166 = vector.extract_strided_slice %165 {offsets = [0, 0], sizes = [8, 32], strides = [1, 1]} : vector<8x128xf32> to vector<8x32xf32>
    %167 = arith.negf %166 : vector<8x32xf32>
    %168 = math.exp %167 : vector<8x32xf32>
    %cst_42 = arith.constant 1.000000e+00 : f32
    %169 = vector.broadcast %cst_42 : f32 to vector<8x32xf32>
    %170 = arith.addf %169, %168 : vector<8x32xf32>
    %171 = arith.divf %169, %170 : vector<8x32xf32>
    %172 = vector.extract_strided_slice %165 {offsets = [0, 32], sizes = [8, 32], strides = [1, 1]} : vector<8x128xf32> to vector<8x32xf32>
    %173 = arith.negf %172 : vector<8x32xf32>
    %174 = math.exp %173 : vector<8x32xf32>
    %cst_43 = arith.constant 1.000000e+00 : f32
    %175 = vector.broadcast %cst_43 : f32 to vector<8x32xf32>
    %176 = arith.addf %175, %174 : vector<8x32xf32>
    %177 = arith.divf %175, %176 : vector<8x32xf32>
    %178 = vector.extract_strided_slice %165 {offsets = [0, 64], sizes = [8, 32], strides = [1, 1]} : vector<8x128xf32> to vector<8x32xf32>
    %179 = math.tanh %178 : vector<8x32xf32>
    %180 = vector.extract_strided_slice %165 {offsets = [0, 96], sizes = [8, 32], strides = [1, 1]} : vector<8x128xf32> to vector<8x32xf32>
    %181 = arith.negf %180 : vector<8x32xf32>
    %182 = math.exp %181 : vector<8x32xf32>
    %cst_44 = arith.constant 1.000000e+00 : f32
    %183 = vector.broadcast %cst_44 : f32 to vector<8x32xf32>
    %184 = arith.addf %183, %182 : vector<8x32xf32>
    %185 = arith.divf %183, %184 : vector<8x32xf32>
    %186 = arith.mulf %177, %127 : vector<8x32xf32>
    %187 = arith.mulf %171, %179 : vector<8x32xf32>
    %188 = arith.addf %186, %187 : vector<8x32xf32>
    %189 = math.tanh %188 : vector<8x32xf32>
    %190 = arith.mulf %185, %189 : vector<8x32xf32>
    %c16_45 = arith.constant 16 : index
    %c0_46 = arith.constant 0 : index
    %191 = vector.load %arg10[%c16_45, %c0_46] : memref<64x32xf32, #tpu.memory_space<vmem>>, vector<8x32xf32>
    tpu.vector_store %arg10[%c16_45, %c0_46], %190 {strides = array<i32>} : memref<64x32xf32, #tpu.memory_space<vmem>>, vector<8x32xf32>,
    %c24 = arith.constant 24 : index
    %c0_47 = arith.constant 0 : index
    %192 = vector.load %arg9[%c24, %c0_47] : memref<64x128xf32, #tpu.memory_space<vmem>>, vector<8x128xf32>
    %193 = arith.addf %192, %160 : vector<8x128xf32>
    %194 = vector.extract_strided_slice %193 {offsets = [0, 0], sizes = [8, 32], strides = [1, 1]} : vector<8x128xf32> to vector<8x32xf32>
    %195 = arith.negf %194 : vector<8x32xf32>
    %196 = math.exp %195 : vector<8x32xf32>
    %cst_48 = arith.constant 1.000000e+00 : f32
    %197 = vector.broadcast %cst_48 : f32 to vector<8x32xf32>
    %198 = arith.addf %197, %196 : vector<8x32xf32>
    %199 = arith.divf %197, %198 : vector<8x32xf32>
    %200 = vector.extract_strided_slice %193 {offsets = [0, 32], sizes = [8, 32], strides = [1, 1]} : vector<8x128xf32> to vector<8x32xf32>
    %201 = arith.negf %200 : vector<8x32xf32>
    %202 = math.exp %201 : vector<8x32xf32>
    %cst_49 = arith.constant 1.000000e+00 : f32
    %203 = vector.broadcast %cst_49 : f32 to vector<8x32xf32>
    %204 = arith.addf %203, %202 : vector<8x32xf32>
    %205 = arith.divf %203, %204 : vector<8x32xf32>
    %206 = vector.extract_strided_slice %193 {offsets = [0, 64], sizes = [8, 32], strides = [1, 1]} : vector<8x128xf32> to vector<8x32xf32>
    %207 = math.tanh %206 : vector<8x32xf32>
    %208 = vector.extract_strided_slice %193 {offsets = [0, 96], sizes = [8, 32], strides = [1, 1]} : vector<8x128xf32> to vector<8x32xf32>
    %209 = arith.negf %208 : vector<8x32xf32>
    %210 = math.exp %209 : vector<8x32xf32>
    %cst_50 = arith.constant 1.000000e+00 : f32
    %211 = vector.broadcast %cst_50 : f32 to vector<8x32xf32>
    %212 = arith.addf %211, %210 : vector<8x32xf32>
    %213 = arith.divf %211, %212 : vector<8x32xf32>
    %214 = arith.mulf %205, %155 : vector<8x32xf32>
    %215 = arith.mulf %199, %207 : vector<8x32xf32>
    %216 = arith.addf %214, %215 : vector<8x32xf32>
    %217 = math.tanh %216 : vector<8x32xf32>
    %218 = arith.mulf %213, %217 : vector<8x32xf32>
    %219 = arith.truncf %218 : vector<8x32xf32> to vector<8x32xbf16>
    %cst_51 = arith.constant dense<0.000000e+00> : vector<8x256xf32>
    %220 = tpu.matmul %219, %7, %cst_51 {dimension_numbers = #tpu.dot_dimension_numbers<[1], [0], [0], [1], [0, 0, 1, 1], [], []>} : vector<8x32xbf16>, vector<32x256xbf16>, vector<8x256xf32> -> vector<8x256xf32>
    %221 = vector.extract_strided_slice %220 {offsets = [0, 0], sizes = [8, 128], strides = [1, 1]} : vector<8x256xf32> to vector<8x128xf32>
    %222 = vector.extract_strided_slice %220 {offsets = [0, 128], sizes = [8, 128], strides = [1, 1]} : vector<8x256xf32> to vector<8x128xf32>
    %223 = arith.addf %222, %11 : vector<8x128xf32>
    %224 = arith.truncf %190 : vector<8x32xf32> to vector<8x32xbf16>
    %cst_52 = arith.constant dense<0.000000e+00> : vector<8x128xf32>
    %225 = tpu.matmul %224, %8, %cst_52 {dimension_numbers = #tpu.dot_dimension_numbers<[1], [0], [0], [1], [0, 0, 1, 1], [], []>} : vector<8x32xbf16>, vector<32x128xbf16>, vector<8x128xf32> -> vector<8x128xf32>
    %226 = arith.addf %223, %225 : vector<8x128xf32>
    %227 = vector.extract_strided_slice %226 {offsets = [0, 0], sizes = [8, 32], strides = [1, 1]} : vector<8x128xf32> to vector<8x32xf32>
    %228 = arith.negf %227 : vector<8x32xf32>
    %229 = math.exp %228 : vector<8x32xf32>
    %cst_53 = arith.constant 1.000000e+00 : f32
    %230 = vector.broadcast %cst_53 : f32 to vector<8x32xf32>
    %231 = arith.addf %230, %229 : vector<8x32xf32>
    %232 = arith.divf %230, %231 : vector<8x32xf32>
    %233 = vector.extract_strided_slice %226 {offsets = [0, 32], sizes = [8, 32], strides = [1, 1]} : vector<8x128xf32> to vector<8x32xf32>
    %234 = arith.negf %233 : vector<8x32xf32>
    %235 = math.exp %234 : vector<8x32xf32>
    %cst_54 = arith.constant 1.000000e+00 : f32
    %236 = vector.broadcast %cst_54 : f32 to vector<8x32xf32>
    %237 = arith.addf %236, %235 : vector<8x32xf32>
    %238 = arith.divf %236, %237 : vector<8x32xf32>
    %239 = vector.extract_strided_slice %226 {offsets = [0, 64], sizes = [8, 32], strides = [1, 1]} : vector<8x128xf32> to vector<8x32xf32>
    %240 = math.tanh %239 : vector<8x32xf32>
    %241 = vector.extract_strided_slice %226 {offsets = [0, 96], sizes = [8, 32], strides = [1, 1]} : vector<8x128xf32> to vector<8x32xf32>
    %242 = arith.negf %241 : vector<8x32xf32>
    %243 = math.exp %242 : vector<8x32xf32>
    %cst_55 = arith.constant 1.000000e+00 : f32
    %244 = vector.broadcast %cst_55 : f32 to vector<8x32xf32>
    %245 = arith.addf %244, %243 : vector<8x32xf32>
    %246 = arith.divf %244, %245 : vector<8x32xf32>
    %247 = arith.mulf %238, %188 : vector<8x32xf32>
    %248 = arith.mulf %232, %240 : vector<8x32xf32>
    %249 = arith.addf %247, %248 : vector<8x32xf32>
    %250 = math.tanh %249 : vector<8x32xf32>
    %251 = arith.mulf %246, %250 : vector<8x32xf32>
    %c24_56 = arith.constant 24 : index
    %c0_57 = arith.constant 0 : index
    %252 = vector.load %arg10[%c24_56, %c0_57] : memref<64x32xf32, #tpu.memory_space<vmem>>, vector<8x32xf32>
    tpu.vector_store %arg10[%c24_56, %c0_57], %251 {strides = array<i32>} : memref<64x32xf32, #tpu.memory_space<vmem>>, vector<8x32xf32>,
    %c32 = arith.constant 32 : index
    %c0_58 = arith.constant 0 : index
    %253 = vector.load %arg9[%c32, %c0_58] : memref<64x128xf32, #tpu.memory_space<vmem>>, vector<8x128xf32>
    %254 = arith.addf %253, %221 : vector<8x128xf32>
    %255 = vector.extract_strided_slice %254 {offsets = [0, 0], sizes = [8, 32], strides = [1, 1]} : vector<8x128xf32> to vector<8x32xf32>
    %256 = arith.negf %255 : vector<8x32xf32>
    %257 = math.exp %256 : vector<8x32xf32>
    %cst_59 = arith.constant 1.000000e+00 : f32
    %258 = vector.broadcast %cst_59 : f32 to vector<8x32xf32>
    %259 = arith.addf %258, %257 : vector<8x32xf32>
    %260 = arith.divf %258, %259 : vector<8x32xf32>
    %261 = vector.extract_strided_slice %254 {offsets = [0, 32], sizes = [8, 32], strides = [1, 1]} : vector<8x128xf32> to vector<8x32xf32>
    %262 = arith.negf %261 : vector<8x32xf32>
    %263 = math.exp %262 : vector<8x32xf32>
    %cst_60 = arith.constant 1.000000e+00 : f32
    %264 = vector.broadcast %cst_60 : f32 to vector<8x32xf32>
    %265 = arith.addf %264, %263 : vector<8x32xf32>
    %266 = arith.divf %264, %265 : vector<8x32xf32>
    %267 = vector.extract_strided_slice %254 {offsets = [0, 64], sizes = [8, 32], strides = [1, 1]} : vector<8x128xf32> to vector<8x32xf32>
    %268 = math.tanh %267 : vector<8x32xf32>
    %269 = vector.extract_strided_slice %254 {offsets = [0, 96], sizes = [8, 32], strides = [1, 1]} : vector<8x128xf32> to vector<8x32xf32>
    %270 = arith.negf %269 : vector<8x32xf32>
    %271 = math.exp %270 : vector<8x32xf32>
    %cst_61 = arith.constant 1.000000e+00 : f32
    %272 = vector.broadcast %cst_61 : f32 to vector<8x32xf32>
    %273 = arith.addf %272, %271 : vector<8x32xf32>
    %274 = arith.divf %272, %273 : vector<8x32xf32>
    %275 = arith.mulf %266, %216 : vector<8x32xf32>
    %276 = arith.mulf %260, %268 : vector<8x32xf32>
    %277 = arith.addf %275, %276 : vector<8x32xf32>
    %278 = math.tanh %277 : vector<8x32xf32>
    %279 = arith.mulf %274, %278 : vector<8x32xf32>
    %280 = arith.truncf %279 : vector<8x32xf32> to vector<8x32xbf16>
    %cst_62 = arith.constant dense<0.000000e+00> : vector<8x256xf32>
    %281 = tpu.matmul %280, %7, %cst_62 {dimension_numbers = #tpu.dot_dimension_numbers<[1], [0], [0], [1], [0, 0, 1, 1], [], []>} : vector<8x32xbf16>, vector<32x256xbf16>, vector<8x256xf32> -> vector<8x256xf32>
    %282 = vector.extract_strided_slice %281 {offsets = [0, 0], sizes = [8, 128], strides = [1, 1]} : vector<8x256xf32> to vector<8x128xf32>
    %283 = vector.extract_strided_slice %281 {offsets = [0, 128], sizes = [8, 128], strides = [1, 1]} : vector<8x256xf32> to vector<8x128xf32>
    %284 = arith.addf %283, %11 : vector<8x128xf32>
    %285 = arith.truncf %251 : vector<8x32xf32> to vector<8x32xbf16>
    %cst_63 = arith.constant dense<0.000000e+00> : vector<8x128xf32>
    %286 = tpu.matmul %285, %8, %cst_63 {dimension_numbers = #tpu.dot_dimension_numbers<[1], [0], [0], [1], [0, 0, 1, 1], [], []>} : vector<8x32xbf16>, vector<32x128xbf16>, vector<8x128xf32> -> vector<8x128xf32>
    %287 = arith.addf %284, %286 : vector<8x128xf32>
    %288 = vector.extract_strided_slice %287 {offsets = [0, 0], sizes = [8, 32], strides = [1, 1]} : vector<8x128xf32> to vector<8x32xf32>
    %289 = arith.negf %288 : vector<8x32xf32>
    %290 = math.exp %289 : vector<8x32xf32>
    %cst_64 = arith.constant 1.000000e+00 : f32
    %291 = vector.broadcast %cst_64 : f32 to vector<8x32xf32>
    %292 = arith.addf %291, %290 : vector<8x32xf32>
    %293 = arith.divf %291, %292 : vector<8x32xf32>
    %294 = vector.extract_strided_slice %287 {offsets = [0, 32], sizes = [8, 32], strides = [1, 1]} : vector<8x128xf32> to vector<8x32xf32>
    %295 = arith.negf %294 : vector<8x32xf32>
    %296 = math.exp %295 : vector<8x32xf32>
    %cst_65 = arith.constant 1.000000e+00 : f32
    %297 = vector.broadcast %cst_65 : f32 to vector<8x32xf32>
    %298 = arith.addf %297, %296 : vector<8x32xf32>
    %299 = arith.divf %297, %298 : vector<8x32xf32>
    %300 = vector.extract_strided_slice %287 {offsets = [0, 64], sizes = [8, 32], strides = [1, 1]} : vector<8x128xf32> to vector<8x32xf32>
    %301 = math.tanh %300 : vector<8x32xf32>
    %302 = vector.extract_strided_slice %287 {offsets = [0, 96], sizes = [8, 32], strides = [1, 1]} : vector<8x128xf32> to vector<8x32xf32>
    %303 = arith.negf %302 : vector<8x32xf32>
    %304 = math.exp %303 : vector<8x32xf32>
    %cst_66 = arith.constant 1.000000e+00 : f32
    %305 = vector.broadcast %cst_66 : f32 to vector<8x32xf32>
    %306 = arith.addf %305, %304 : vector<8x32xf32>
    %307 = arith.divf %305, %306 : vector<8x32xf32>
    %308 = arith.mulf %299, %249 : vector<8x32xf32>
    %309 = arith.mulf %293, %301 : vector<8x32xf32>
    %310 = arith.addf %308, %309 : vector<8x32xf32>
    %311 = math.tanh %310 : vector<8x32xf32>
    %312 = arith.mulf %307, %311 : vector<8x32xf32>
    %c32_67 = arith.constant 32 : index
    %c0_68 = arith.constant 0 : index
    %313 = vector.load %arg10[%c32_67, %c0_68] : memref<64x32xf32, #tpu.memory_space<vmem>>, vector<8x32xf32>
    tpu.vector_store %arg10[%c32_67, %c0_68], %312 {strides = array<i32>} : memref<64x32xf32, #tpu.memory_space<vmem>>, vector<8x32xf32>,
    %c40 = arith.constant 40 : index
    %c0_69 = arith.constant 0 : index
    %314 = vector.load %arg9[%c40, %c0_69] : memref<64x128xf32, #tpu.memory_space<vmem>>, vector<8x128xf32>
    %315 = arith.addf %314, %282 : vector<8x128xf32>
    %316 = vector.extract_strided_slice %315 {offsets = [0, 0], sizes = [8, 32], strides = [1, 1]} : vector<8x128xf32> to vector<8x32xf32>
    %317 = arith.negf %316 : vector<8x32xf32>
    %318 = math.exp %317 : vector<8x32xf32>
    %cst_70 = arith.constant 1.000000e+00 : f32
    %319 = vector.broadcast %cst_70 : f32 to vector<8x32xf32>
    %320 = arith.addf %319, %318 : vector<8x32xf32>
    %321 = arith.divf %319, %320 : vector<8x32xf32>
    %322 = vector.extract_strided_slice %315 {offsets = [0, 32], sizes = [8, 32], strides = [1, 1]} : vector<8x128xf32> to vector<8x32xf32>
    %323 = arith.negf %322 : vector<8x32xf32>
    %324 = math.exp %323 : vector<8x32xf32>
    %cst_71 = arith.constant 1.000000e+00 : f32
    %325 = vector.broadcast %cst_71 : f32 to vector<8x32xf32>
    %326 = arith.addf %325, %324 : vector<8x32xf32>
    %327 = arith.divf %325, %326 : vector<8x32xf32>
    %328 = vector.extract_strided_slice %315 {offsets = [0, 64], sizes = [8, 32], strides = [1, 1]} : vector<8x128xf32> to vector<8x32xf32>
    %329 = math.tanh %328 : vector<8x32xf32>
    %330 = vector.extract_strided_slice %315 {offsets = [0, 96], sizes = [8, 32], strides = [1, 1]} : vector<8x128xf32> to vector<8x32xf32>
    %331 = arith.negf %330 : vector<8x32xf32>
    %332 = math.exp %331 : vector<8x32xf32>
    %cst_72 = arith.constant 1.000000e+00 : f32
    %333 = vector.broadcast %cst_72 : f32 to vector<8x32xf32>
    %334 = arith.addf %333, %332 : vector<8x32xf32>
    %335 = arith.divf %333, %334 : vector<8x32xf32>
    %336 = arith.mulf %327, %277 : vector<8x32xf32>
    %337 = arith.mulf %321, %329 : vector<8x32xf32>
    %338 = arith.addf %336, %337 : vector<8x32xf32>
    %339 = math.tanh %338 : vector<8x32xf32>
    %340 = arith.mulf %335, %339 : vector<8x32xf32>
    %341 = arith.truncf %340 : vector<8x32xf32> to vector<8x32xbf16>
    %cst_73 = arith.constant dense<0.000000e+00> : vector<8x256xf32>
    %342 = tpu.matmul %341, %7, %cst_73 {dimension_numbers = #tpu.dot_dimension_numbers<[1], [0], [0], [1], [0, 0, 1, 1], [], []>} : vector<8x32xbf16>, vector<32x256xbf16>, vector<8x256xf32> -> vector<8x256xf32>
    %343 = vector.extract_strided_slice %342 {offsets = [0, 0], sizes = [8, 128], strides = [1, 1]} : vector<8x256xf32> to vector<8x128xf32>
    %344 = vector.extract_strided_slice %342 {offsets = [0, 128], sizes = [8, 128], strides = [1, 1]} : vector<8x256xf32> to vector<8x128xf32>
    %345 = arith.addf %344, %11 : vector<8x128xf32>
    %346 = arith.truncf %312 : vector<8x32xf32> to vector<8x32xbf16>
    %cst_74 = arith.constant dense<0.000000e+00> : vector<8x128xf32>
    %347 = tpu.matmul %346, %8, %cst_74 {dimension_numbers = #tpu.dot_dimension_numbers<[1], [0], [0], [1], [0, 0, 1, 1], [], []>} : vector<8x32xbf16>, vector<32x128xbf16>, vector<8x128xf32> -> vector<8x128xf32>
    %348 = arith.addf %345, %347 : vector<8x128xf32>
    %349 = vector.extract_strided_slice %348 {offsets = [0, 0], sizes = [8, 32], strides = [1, 1]} : vector<8x128xf32> to vector<8x32xf32>
    %350 = arith.negf %349 : vector<8x32xf32>
    %351 = math.exp %350 : vector<8x32xf32>
    %cst_75 = arith.constant 1.000000e+00 : f32
    %352 = vector.broadcast %cst_75 : f32 to vector<8x32xf32>
    %353 = arith.addf %352, %351 : vector<8x32xf32>
    %354 = arith.divf %352, %353 : vector<8x32xf32>
    %355 = vector.extract_strided_slice %348 {offsets = [0, 32], sizes = [8, 32], strides = [1, 1]} : vector<8x128xf32> to vector<8x32xf32>
    %356 = arith.negf %355 : vector<8x32xf32>
    %357 = math.exp %356 : vector<8x32xf32>
    %cst_76 = arith.constant 1.000000e+00 : f32
    %358 = vector.broadcast %cst_76 : f32 to vector<8x32xf32>
    %359 = arith.addf %358, %357 : vector<8x32xf32>
    %360 = arith.divf %358, %359 : vector<8x32xf32>
    %361 = vector.extract_strided_slice %348 {offsets = [0, 64], sizes = [8, 32], strides = [1, 1]} : vector<8x128xf32> to vector<8x32xf32>
    %362 = math.tanh %361 : vector<8x32xf32>
    %363 = vector.extract_strided_slice %348 {offsets = [0, 96], sizes = [8, 32], strides = [1, 1]} : vector<8x128xf32> to vector<8x32xf32>
    %364 = arith.negf %363 : vector<8x32xf32>
    %365 = math.exp %364 : vector<8x32xf32>
    %cst_77 = arith.constant 1.000000e+00 : f32
    %366 = vector.broadcast %cst_77 : f32 to vector<8x32xf32>
    %367 = arith.addf %366, %365 : vector<8x32xf32>
    %368 = arith.divf %366, %367 : vector<8x32xf32>
    %369 = arith.mulf %360, %310 : vector<8x32xf32>
    %370 = arith.mulf %354, %362 : vector<8x32xf32>
    %371 = arith.addf %369, %370 : vector<8x32xf32>
    %372 = math.tanh %371 : vector<8x32xf32>
    %373 = arith.mulf %368, %372 : vector<8x32xf32>
    %c40_78 = arith.constant 40 : index
    %c0_79 = arith.constant 0 : index
    %374 = vector.load %arg10[%c40_78, %c0_79] : memref<64x32xf32, #tpu.memory_space<vmem>>, vector<8x32xf32>
    tpu.vector_store %arg10[%c40_78, %c0_79], %373 {strides = array<i32>} : memref<64x32xf32, #tpu.memory_space<vmem>>, vector<8x32xf32>,
    %c48 = arith.constant 48 : index
    %c0_80 = arith.constant 0 : index
    %375 = vector.load %arg9[%c48, %c0_80] : memref<64x128xf32, #tpu.memory_space<vmem>>, vector<8x128xf32>
    %376 = arith.addf %375, %343 : vector<8x128xf32>
    %377 = vector.extract_strided_slice %376 {offsets = [0, 0], sizes = [8, 32], strides = [1, 1]} : vector<8x128xf32> to vector<8x32xf32>
    %378 = arith.negf %377 : vector<8x32xf32>
    %379 = math.exp %378 : vector<8x32xf32>
    %cst_81 = arith.constant 1.000000e+00 : f32
    %380 = vector.broadcast %cst_81 : f32 to vector<8x32xf32>
    %381 = arith.addf %380, %379 : vector<8x32xf32>
    %382 = arith.divf %380, %381 : vector<8x32xf32>
    %383 = vector.extract_strided_slice %376 {offsets = [0, 32], sizes = [8, 32], strides = [1, 1]} : vector<8x128xf32> to vector<8x32xf32>
    %384 = arith.negf %383 : vector<8x32xf32>
    %385 = math.exp %384 : vector<8x32xf32>
    %cst_82 = arith.constant 1.000000e+00 : f32
    %386 = vector.broadcast %cst_82 : f32 to vector<8x32xf32>
    %387 = arith.addf %386, %385 : vector<8x32xf32>
    %388 = arith.divf %386, %387 : vector<8x32xf32>
    %389 = vector.extract_strided_slice %376 {offsets = [0, 64], sizes = [8, 32], strides = [1, 1]} : vector<8x128xf32> to vector<8x32xf32>
    %390 = math.tanh %389 : vector<8x32xf32>
    %391 = vector.extract_strided_slice %376 {offsets = [0, 96], sizes = [8, 32], strides = [1, 1]} : vector<8x128xf32> to vector<8x32xf32>
    %392 = arith.negf %391 : vector<8x32xf32>
    %393 = math.exp %392 : vector<8x32xf32>
    %cst_83 = arith.constant 1.000000e+00 : f32
    %394 = vector.broadcast %cst_83 : f32 to vector<8x32xf32>
    %395 = arith.addf %394, %393 : vector<8x32xf32>
    %396 = arith.divf %394, %395 : vector<8x32xf32>
    %397 = arith.mulf %388, %338 : vector<8x32xf32>
    %398 = arith.mulf %382, %390 : vector<8x32xf32>
    %399 = arith.addf %397, %398 : vector<8x32xf32>
    %400 = math.tanh %399 : vector<8x32xf32>
    %401 = arith.mulf %396, %400 : vector<8x32xf32>
    %402 = arith.truncf %401 : vector<8x32xf32> to vector<8x32xbf16>
    %cst_84 = arith.constant dense<0.000000e+00> : vector<8x256xf32>
    %403 = tpu.matmul %402, %7, %cst_84 {dimension_numbers = #tpu.dot_dimension_numbers<[1], [0], [0], [1], [0, 0, 1, 1], [], []>} : vector<8x32xbf16>, vector<32x256xbf16>, vector<8x256xf32> -> vector<8x256xf32>
    %404 = vector.extract_strided_slice %403 {offsets = [0, 0], sizes = [8, 128], strides = [1, 1]} : vector<8x256xf32> to vector<8x128xf32>
    %405 = vector.extract_strided_slice %403 {offsets = [0, 128], sizes = [8, 128], strides = [1, 1]} : vector<8x256xf32> to vector<8x128xf32>
    %406 = arith.addf %405, %11 : vector<8x128xf32>
    %407 = arith.truncf %373 : vector<8x32xf32> to vector<8x32xbf16>
    %cst_85 = arith.constant dense<0.000000e+00> : vector<8x128xf32>
    %408 = tpu.matmul %407, %8, %cst_85 {dimension_numbers = #tpu.dot_dimension_numbers<[1], [0], [0], [1], [0, 0, 1, 1], [], []>} : vector<8x32xbf16>, vector<32x128xbf16>, vector<8x128xf32> -> vector<8x128xf32>
    %409 = arith.addf %406, %408 : vector<8x128xf32>
    %410 = vector.extract_strided_slice %409 {offsets = [0, 0], sizes = [8, 32], strides = [1, 1]} : vector<8x128xf32> to vector<8x32xf32>
    %411 = arith.negf %410 : vector<8x32xf32>
    %412 = math.exp %411 : vector<8x32xf32>
    %cst_86 = arith.constant 1.000000e+00 : f32
    %413 = vector.broadcast %cst_86 : f32 to vector<8x32xf32>
    %414 = arith.addf %413, %412 : vector<8x32xf32>
    %415 = arith.divf %413, %414 : vector<8x32xf32>
    %416 = vector.extract_strided_slice %409 {offsets = [0, 32], sizes = [8, 32], strides = [1, 1]} : vector<8x128xf32> to vector<8x32xf32>
    %417 = arith.negf %416 : vector<8x32xf32>
    %418 = math.exp %417 : vector<8x32xf32>
    %cst_87 = arith.constant 1.000000e+00 : f32
    %419 = vector.broadcast %cst_87 : f32 to vector<8x32xf32>
    %420 = arith.addf %419, %418 : vector<8x32xf32>
    %421 = arith.divf %419, %420 : vector<8x32xf32>
    %422 = vector.extract_strided_slice %409 {offsets = [0, 64], sizes = [8, 32], strides = [1, 1]} : vector<8x128xf32> to vector<8x32xf32>
    %423 = math.tanh %422 : vector<8x32xf32>
    %424 = vector.extract_strided_slice %409 {offsets = [0, 96], sizes = [8, 32], strides = [1, 1]} : vector<8x128xf32> to vector<8x32xf32>
    %425 = arith.negf %424 : vector<8x32xf32>
    %426 = math.exp %425 : vector<8x32xf32>
    %cst_88 = arith.constant 1.000000e+00 : f32
    %427 = vector.broadcast %cst_88 : f32 to vector<8x32xf32>
    %428 = arith.addf %427, %426 : vector<8x32xf32>
    %429 = arith.divf %427, %428 : vector<8x32xf32>
    %430 = arith.mulf %421, %371 : vector<8x32xf32>
    %431 = arith.mulf %415, %423 : vector<8x32xf32>
    %432 = arith.addf %430, %431 : vector<8x32xf32>
    %433 = math.tanh %432 : vector<8x32xf32>
    %434 = arith.mulf %429, %433 : vector<8x32xf32>
    %c48_89 = arith.constant 48 : index
    %c0_90 = arith.constant 0 : index
    %435 = vector.load %arg10[%c48_89, %c0_90] : memref<64x32xf32, #tpu.memory_space<vmem>>, vector<8x32xf32>
    tpu.vector_store %arg10[%c48_89, %c0_90], %434 {strides = array<i32>} : memref<64x32xf32, #tpu.memory_space<vmem>>, vector<8x32xf32>,
    %c56 = arith.constant 56 : index
    %c0_91 = arith.constant 0 : index
    %436 = vector.load %arg9[%c56, %c0_91] : memref<64x128xf32, #tpu.memory_space<vmem>>, vector<8x128xf32>
    %437 = arith.addf %436, %404 : vector<8x128xf32>
    %438 = vector.extract_strided_slice %437 {offsets = [0, 0], sizes = [8, 32], strides = [1, 1]} : vector<8x128xf32> to vector<8x32xf32>
    %439 = arith.negf %438 : vector<8x32xf32>
    %440 = math.exp %439 : vector<8x32xf32>
    %cst_92 = arith.constant 1.000000e+00 : f32
    %441 = vector.broadcast %cst_92 : f32 to vector<8x32xf32>
    %442 = arith.addf %441, %440 : vector<8x32xf32>
    %443 = arith.divf %441, %442 : vector<8x32xf32>
    %444 = vector.extract_strided_slice %437 {offsets = [0, 32], sizes = [8, 32], strides = [1, 1]} : vector<8x128xf32> to vector<8x32xf32>
    %445 = arith.negf %444 : vector<8x32xf32>
    %446 = math.exp %445 : vector<8x32xf32>
    %cst_93 = arith.constant 1.000000e+00 : f32
    %447 = vector.broadcast %cst_93 : f32 to vector<8x32xf32>
    %448 = arith.addf %447, %446 : vector<8x32xf32>
    %449 = arith.divf %447, %448 : vector<8x32xf32>
    %450 = vector.extract_strided_slice %437 {offsets = [0, 64], sizes = [8, 32], strides = [1, 1]} : vector<8x128xf32> to vector<8x32xf32>
    %451 = math.tanh %450 : vector<8x32xf32>
    %452 = vector.extract_strided_slice %437 {offsets = [0, 96], sizes = [8, 32], strides = [1, 1]} : vector<8x128xf32> to vector<8x32xf32>
    %453 = arith.negf %452 : vector<8x32xf32>
    %454 = math.exp %453 : vector<8x32xf32>
    %cst_94 = arith.constant 1.000000e+00 : f32
    %455 = vector.broadcast %cst_94 : f32 to vector<8x32xf32>
    %456 = arith.addf %455, %454 : vector<8x32xf32>
    %457 = arith.divf %455, %456 : vector<8x32xf32>
    %458 = arith.mulf %449, %399 : vector<8x32xf32>
    %459 = arith.mulf %443, %451 : vector<8x32xf32>
    %460 = arith.addf %458, %459 : vector<8x32xf32>
    %461 = math.tanh %460 : vector<8x32xf32>
    %462 = arith.mulf %457, %461 : vector<8x32xf32>
    %463 = arith.truncf %462 : vector<8x32xf32> to vector<8x32xbf16>
    %cst_95 = arith.constant dense<0.000000e+00> : vector<8x256xf32>
    %464 = tpu.matmul %463, %7, %cst_95 {dimension_numbers = #tpu.dot_dimension_numbers<[1], [0], [0], [1], [0, 0, 1, 1], [], []>} : vector<8x32xbf16>, vector<32x256xbf16>, vector<8x256xf32> -> vector<8x256xf32>
    %465 = vector.extract_strided_slice %464 {offsets = [0, 128], sizes = [8, 128], strides = [1, 1]} : vector<8x256xf32> to vector<8x128xf32>
    %466 = arith.addf %465, %11 : vector<8x128xf32>
    %467 = arith.truncf %434 : vector<8x32xf32> to vector<8x32xbf16>
    %cst_96 = arith.constant dense<0.000000e+00> : vector<8x128xf32>
    %468 = tpu.matmul %467, %8, %cst_96 {dimension_numbers = #tpu.dot_dimension_numbers<[1], [0], [0], [1], [0, 0, 1, 1], [], []>} : vector<8x32xbf16>, vector<32x128xbf16>, vector<8x128xf32> -> vector<8x128xf32>
    %469 = arith.addf %466, %468 : vector<8x128xf32>
    %470 = vector.extract_strided_slice %469 {offsets = [0, 0], sizes = [8, 32], strides = [1, 1]} : vector<8x128xf32> to vector<8x32xf32>
    %471 = arith.negf %470 : vector<8x32xf32>
    %472 = math.exp %471 : vector<8x32xf32>
    %cst_97 = arith.constant 1.000000e+00 : f32
    %473 = vector.broadcast %cst_97 : f32 to vector<8x32xf32>
    %474 = arith.addf %473, %472 : vector<8x32xf32>
    %475 = arith.divf %473, %474 : vector<8x32xf32>
    %476 = vector.extract_strided_slice %469 {offsets = [0, 32], sizes = [8, 32], strides = [1, 1]} : vector<8x128xf32> to vector<8x32xf32>
    %477 = arith.negf %476 : vector<8x32xf32>
    %478 = math.exp %477 : vector<8x32xf32>
    %cst_98 = arith.constant 1.000000e+00 : f32
    %479 = vector.broadcast %cst_98 : f32 to vector<8x32xf32>
    %480 = arith.addf %479, %478 : vector<8x32xf32>
    %481 = arith.divf %479, %480 : vector<8x32xf32>
    %482 = vector.extract_strided_slice %469 {offsets = [0, 64], sizes = [8, 32], strides = [1, 1]} : vector<8x128xf32> to vector<8x32xf32>
    %483 = math.tanh %482 : vector<8x32xf32>
    %484 = vector.extract_strided_slice %469 {offsets = [0, 96], sizes = [8, 32], strides = [1, 1]} : vector<8x128xf32> to vector<8x32xf32>
    %485 = arith.negf %484 : vector<8x32xf32>
    %486 = math.exp %485 : vector<8x32xf32>
    %cst_99 = arith.constant 1.000000e+00 : f32
    %487 = vector.broadcast %cst_99 : f32 to vector<8x32xf32>
    %488 = arith.addf %487, %486 : vector<8x32xf32>
    %489 = arith.divf %487, %488 : vector<8x32xf32>
    %490 = arith.mulf %481, %432 : vector<8x32xf32>
    %491 = arith.mulf %475, %483 : vector<8x32xf32>
    %492 = arith.addf %490, %491 : vector<8x32xf32>
    %493 = math.tanh %492 : vector<8x32xf32>
    %494 = arith.mulf %489, %493 : vector<8x32xf32>
    %c56_100 = arith.constant 56 : index
    %c0_101 = arith.constant 0 : index
    %495 = vector.load %arg10[%c56_100, %c0_101] : memref<64x32xf32, #tpu.memory_space<vmem>>, vector<8x32xf32>
    tpu.vector_store %arg10[%c56_100, %c0_101], %494 {strides = array<i32>} : memref<64x32xf32, #tpu.memory_space<vmem>>, vector<8x32xf32>,
    %c0_102 = arith.constant 0 : index
    %c0_103 = arith.constant 0 : index
    %496 = vector.load %arg10[%c0_102, %c0_103] : memref<64x32xf32, #tpu.memory_space<vmem>>, vector<64x32xf32>
    %497 = arith.truncf %496 : vector<64x32xf32> to vector<64x32xbf16>
    %c0_104 = arith.constant 0 : index
    %c0_105 = arith.constant 0 : index
    %498 = vector.load %arg6[%c0_104, %c0_105] : memref<32x128xbf16, #tpu.memory_space<vmem>>, vector<32x128xbf16>
    %cst_106 = arith.constant dense<0.000000e+00> : vector<64x128xf32>
    %499 = tpu.matmul %497, %498, %cst_106 {dimension_numbers = #tpu.dot_dimension_numbers<[1], [0], [0], [1], [0, 0, 1, 1], [], []>} : vector<64x32xbf16>, vector<32x128xbf16>, vector<64x128xf32> -> vector<64x128xf32>
    %c0_107 = arith.constant 0 : index
    %c0_108 = arith.constant 0 : index
    %500 = vector.load %arg7[%c0_107, %c0_108] : memref<1x128xf32, #tpu.memory_space<vmem>>, vector<1x128xf32>
    %501 = vector.broadcast %500 : vector<1x128xf32> to vector<64x128xf32>
    %502 = arith.addf %499, %501 : vector<64x128xf32>
    %cst_109 = arith.constant dense<0xFF800000> : vector<64xf32>
    %503 = vector.multi_reduction <maximumf>, %502, %cst_109 [1] : vector<64x128xf32> to vector<64xf32>
    %504 = vector.shape_cast %503 : vector<64xf32> to vector<64x1xf32>
    %505 = vector.broadcast %504 : vector<64x1xf32> to vector<64x128xf32>
    %506 = arith.subf %502, %505 : vector<64x128xf32>
    %507 = math.exp %506 : vector<64x128xf32>
    %cst_110 = arith.constant dense<0.000000e+00> : vector<64xf32>
    %508 = vector.multi_reduction <add>, %507, %cst_110 [1] : vector<64x128xf32> to vector<64xf32>
    %509 = vector.shape_cast %508 : vector<64xf32> to vector<64x1xf32>
    %510 = math.log %509 : vector<64x1xf32>
    %511 = arith.addf %504, %510 : vector<64x1xf32>
    %512 = vector.broadcast %511 : vector<64x1xf32> to vector<64x128xf32>
    %513 = arith.subf %502, %512 : vector<64x128xf32>
    %514 = tpu.iota {dimensions = array<i32: 1>} : vector<8x64xi32>
    %515 = tpu.iota {dimensions = array<i32: 0>} : vector<8x64xi32>
    %c8_i32 = arith.constant 8 : i32
    %c0_i32 = arith.constant 0 : i32
    %516 = arith.cmpi eq, %c8_i32, %c0_i32 : i32
    %c1_i32 = arith.constant 1 : i32
    %517 = arith.select %516, %c1_i32, %c8_i32 : i32
    %518 = vector.broadcast %517 : i32 to vector<8x64xi32>
    %519 = arith.remsi %514, %518 : vector<8x64xi32>
    %c0_i32_111 = arith.constant 0 : i32
    %520 = vector.broadcast %c0_i32_111 : i32 to vector<8x64xi32>
    %521 = arith.cmpi ne, %519, %520 : vector<8x64xi32>
    %c0_i32_112 = arith.constant 0 : i32
    %522 = vector.broadcast %c0_i32_112 : i32 to vector<8x64xi32>
    %523 = arith.cmpi slt, %519, %522 : vector<8x64xi32>
    %c0_i32_113 = arith.constant 0 : i32
    %524 = arith.cmpi slt, %517, %c0_i32_113 : i32
    %525 = vector.broadcast %524 : i1 to vector<8x64xi1>
    %526 = vector.broadcast %525 : vector<8x64xi1> to vector<8x64xi1>
    %527 = arith.xori %523, %526 : vector<8x64xi1>
    %528 = arith.andi %527, %521 : vector<8x64xi1>
    %529 = vector.broadcast %517 : i32 to vector<8x64xi32>
    %530 = arith.addi %519, %529 : vector<8x64xi32>
    %531 = arith.select %528, %530, %519 : vector<8x64xi1>, vector<8x64xi32>
    %532 = arith.cmpi eq, %531, %515 : vector<8x64xi32>
    %cst_114 = arith.constant 1.250000e-01 : f32
    %cst_115 = arith.constant 0.000000e+00 : f32
    %533 = vector.broadcast %cst_114 : f32 to vector<8x64xf32>
    %534 = vector.broadcast %cst_115 : f32 to vector<8x64xf32>
    %535 = arith.select %532, %533, %534 : vector<8x64xi1>, vector<8x64xf32>
    %cst_116 = arith.constant dense<0.000000e+00> : vector<8x128xf32>
    %536 = tpu.matmul %535, %513, %cst_116 {dimension_numbers = #tpu.dot_dimension_numbers<[1], [0], [0], [1], [0, 0, 1, 1], [], []>} : vector<8x64xf32>, vector<64x128xf32>, vector<8x128xf32> -> vector<8x128xf32>
    %c0_117 = arith.constant 0 : index
    %c0_118 = arith.constant 0 : index
    %537 = vector.load %arg8[%c0_117, %c0_118] : memref<8x128xf32, #tpu.memory_space<vmem>>, vector<8x128xf32>
    tpu.vector_store %arg8[%c0_117, %c0_118], %536 {strides = array<i32>} : memref<8x128xf32, #tpu.memory_space<vmem>>, vector<8x128xf32>,
    return
  }
}

</mosaic_0001>

<llo_original>
// kernel: lstm_keyword_spotter.1
$region0: #{lstm_keyword_spotter.1}
  #allocation0 [shape = 'u32[]', space=smem, size = 0x4, offset = 0x4, fixed_abs, tag = 'smem constant byte address 0x4 - core index']
  #allocation1 [shape = 'u32[144,128]{1,0:T(1,128)}', space=vmem, size = 0x12000, scoped, tag = 'internal scratch']
  #allocation2 [shape = 'f32[64,128]{1,0:T(8,128)}', space=vmem, size = 0x8000, scoped, tag = 'scratch operand']
  #allocation3 [shape = 'f32[64,32]{1,0:T(8,128)}', space=vmem, size = 0x8000, scoped, tag = 'scratch operand']
  %s0 = inlined_call_operand.vmem [shape: bf16[64,16], index: 0, kind: input, shape index: {}]
  %s1 = inlined_call_operand.vmem [shape: bf16[16,128], index: 1, kind: input, shape index: {}]
  %s2 = inlined_call_operand.vmem [shape: bf16[32,256], index: 2, kind: input, shape index: {}]
  %s3 = inlined_call_operand.vmem [shape: bf16[32,128], index: 3, kind: input, shape index: {}]
  %s4 = inlined_call_operand.vmem [shape: f32[1,128], index: 4, kind: input, shape index: {}]
  %s5 = inlined_call_operand.vmem [shape: f32[1,128], index: 5, kind: input, shape index: {}]
  %s6 = inlined_call_operand.vmem [shape: bf16[32,128], index: 6, kind: input, shape index: {}]
  %s7 = inlined_call_operand.vmem [shape: f32[1,128], index: 7, kind: input, shape index: {}]
  %s8 = inlined_call_operand.vmem [shape: f32[8,128], index: 8, kind: output, shape index: {}]
  %s9 = sld [smem:[#allocation0]]
  $region42: #{lstm_keyword_spotter.1} parent=0
    _
  %s11 = ssub.s32 1, %s9
  %s12 = scalar_select 0, %s11, %s9
  // Predicated region
  $region2: #{lstm_keyword_spotter.1} parent=0 // pred_check
    _
  $region3: #{lstm_keyword_spotter.1} parent=0 // pred_check_branch
    %14 = sbr.rel (0) target = $region5
  $region4: #{lstm_keyword_spotter.1} parent=0 // pred_region
    _
  $region5: #{lstm_keyword_spotter.1} parent=0 // pred_fallthru
    _
  // Predicated region
  $region6: #{lstm_keyword_spotter.1} parent=0 // pred_check
    _
  $region7: #{lstm_keyword_spotter.1} parent=0 // pred_check_branch
    %16 = sbr.rel (0) target = $region9
  $region8: #{lstm_keyword_spotter.1} parent=0 // pred_region
    _
  $region9: #{lstm_keyword_spotter.1} parent=0 // pred_fallthru
    _
  // Predicated region
  $region10: #{lstm_keyword_spotter.1} parent=0 // pred_check
    _
  $region11: #{lstm_keyword_spotter.1} parent=0 // pred_check_branch
    %18 = sbr.rel (0) target = $region13
  $region12: #{lstm_keyword_spotter.1} parent=0 // pred_region
    _
  $region13: #{lstm_keyword_spotter.1} parent=0 // pred_fallthru
    _
  // Predicated region
  $region14: #{lstm_keyword_spotter.1} parent=0 // pred_check
    _
  $region15: #{lstm_keyword_spotter.1} parent=0 // pred_check_branch
    %20 = sbr.rel (0) target = $region17
  $region16: #{lstm_keyword_spotter.1} parent=0 // pred_region
    _
  $region17: #{lstm_keyword_spotter.1} parent=0 // pred_fallthru
    _
  // Predicated region
  $region18: #{lstm_keyword_spotter.1} parent=0 // pred_check
    _
  $region19: #{lstm_keyword_spotter.1} parent=0 // pred_check_branch
    %22 = sbr.rel (0) target = $region21
  $region20: #{lstm_keyword_spotter.1} parent=0 // pred_region
    _
  $region21: #{lstm_keyword_spotter.1} parent=0 // pred_fallthru
    _
  // Predicated region
  $region22: #{lstm_keyword_spotter.1} parent=0 // pred_check
    _
  $region23: #{lstm_keyword_spotter.1} parent=0 // pred_check_branch
    %24 = sbr.rel (0) target = $region25
  $region24: #{lstm_keyword_spotter.1} parent=0 // pred_region
    _
  $region25: #{lstm_keyword_spotter.1} parent=0 // pred_fallthru
    _
  // Predicated region
  $region26: #{lstm_keyword_spotter.1} parent=0 // pred_check
    _
  $region27: #{lstm_keyword_spotter.1} parent=0 // pred_check_branch
    %26 = sbr.rel (0) target = $region29
  $region28: #{lstm_keyword_spotter.1} parent=0 // pred_region
    _
  $region29: #{lstm_keyword_spotter.1} parent=0 // pred_fallthru
    _
  // Predicated region
  $region30: #{lstm_keyword_spotter.1} parent=0 // pred_check
    _
  $region31: #{lstm_keyword_spotter.1} parent=0 // pred_check_branch
    %28 = sbr.rel (0) target = $region33
  $region32: #{lstm_keyword_spotter.1} parent=0 // pred_region
    _
  $region33: #{lstm_keyword_spotter.1} parent=0 // pred_fallthru
    _
  %v30 = vld [vmem:[%s0] sm:$0xf]
  %v31 = vld [vmem:[%s0 + $0x4] sm:$0xf]
  %v32 = vld [vmem:[%s0 + $0x8] sm:$0xf]
  %v33 = vld [vmem:[%s0 + $0xc] sm:$0xf]
  %v34 = vld [vmem:[%s0 + $0x10] sm:$0xf]
  %v35 = vld [vmem:[%s0 + $0x14] sm:$0xf]
  %v36 = vld [vmem:[%s0 + $0x18] sm:$0xf]
  %v37 = vld [vmem:[%s0 + $0x1c] sm:$0xf]
  %v38 = vld [vmem:[%s1] sm:$0xf]
  %v39 = vld [vmem:[%s1 + $0x4] sm:$0xf]
  %v40 = vld [vmem:[%s4] sm:$0x1]
  %v42 = vlaneseq
  %v43 = vshrl.u32 %v42, 7
  %v44 = vsub.s32 0, %v43
  %v45 = vrot.slane %v40, %v44
  %v55 = vunpack.c.l.b16 %v30
  %v56 = vunpack.c.l.b16 %v31
  %v57 = vunpack.c.l.b16 %v32
  %v58 = vunpack.c.l.b16 %v33
  %v59 = vunpack.c.l.b16 %v34
  %v60 = vunpack.c.l.b16 %v35
  %v61 = vunpack.c.l.b16 %v36
  %v62 = vunpack.c.l.b16 %v37
  %v63 = vpack.c.b16 %v56, %v55
  %v64 = vpack.c.b16 %v58, %v57
  %v65 = vpack.c.b16 %v60, %v59
  %v66 = vpack.c.b16 %v62, %v61
  %v69 = vunpack.c.l.b16 %v38
  %v70 = vunpack.c.l.b16 %v39
  %v71 = vpack.c.b16 %v70, %v69
  %vm73 = vcmask 130048
  %v75 = vsel %vm73, %v63, 0
  %v78 = vsel %vm73, %v64, 0
  %v81 = vsel %vm73, %v65, 0
  %v84 = vsel %vm73, %v66, 0
  %86 = vmatprep.subr.bf16.mxu0 0
  %87 = vmatpush1.bf16.msra.mxu0 %v71
  %88 = vmatprep.subr.bf16.mxu0 0
  %89 = vmatpush1.bf16.msra.mxu0 0
  %90 = vmatprep.subr.bf16.mxu0 0
  %91 = vmatpush1.bf16.msra.mxu0 0
  %92 = vmatprep.subr.bf16.mxu0 0
  %93 = vmatpush1.bf16.msra.mxu0 0
  %94 = vmatprep.subr.bf16.mxu0 0
  %95 = vmatpush1.bf16.msra.mxu0 0
  %96 = vmatprep.subr.bf16.mxu0 0
  %97 = vmatpush1.bf16.msra.mxu0 0
  %98 = vmatprep.subr.bf16.mxu0 0
  %99 = vmatpush1.bf16.msra.mxu0 0
  %100 = vmatprep.subr.bf16.mxu0 0
  %101 = vmatpush1.bf16.msra.mxu0 0
  %102 = vmatprep.subr.bf16.mxu0 0
  %103 = vmatpush1.bf16.msra.mxu0 0
  %104 = vmatprep.subr.bf16.mxu0 0
  %105 = vmatpush1.bf16.msra.mxu0 0
  %106 = vmatprep.subr.bf16.mxu0 0
  %107 = vmatpush1.bf16.msra.mxu0 0
  %108 = vmatprep.subr.bf16.mxu0 0
  %109 = vmatpush1.bf16.msra.mxu0 0
  %110 = vmatprep.subr.bf16.mxu0 0
  %111 = vmatpush1.bf16.msra.mxu0 0
  %112 = vmatprep.subr.bf16.mxu0 0
  %113 = vmatpush1.bf16.msra.mxu0 0
  %114 = vmatprep.subr.bf16.mxu0 0
  %115 = vmatpush1.bf16.msra.mxu0 0
  %116 = vmatprep.subr.bf16.mxu0 0
  %117 = vmatpush1.bf16.msra.mxu0 0
  %118 = vmatprep.mubr.bf16.mxu0 0
  %119 = vmatmul.mubr.bf16.gmra.mrb[0].mxu0 %v75
  %v120 = vpop.f32.mrb[0].mxu0
  %v121 = vadd.f32 %v45, %v120
  %v122 = vpop.f32.mrb[0].mxu0
  %v123 = vpop.f32.mrb[0].mxu0
  %v124 = vadd.f32 %v45, %v123
  %v125 = vpop.f32.mrb[0].mxu0
  %126 = vmatprep.mubr.bf16.mxu0 0
  %127 = vmatmul.mubr.bf16.gmra.mrb[0].mxu0 %v78
  %v128 = vpop.f32.mrb[0].mxu0
  %v129 = vadd.f32 %v45, %v128
  %v130 = vpop.f32.mrb[0].mxu0
  %v131 = vpop.f32.mrb[0].mxu0
  %v132 = vadd.f32 %v45, %v131
  %v133 = vpop.f32.mrb[0].mxu0
  %134 = vmatprep.mubr.bf16.mxu0 0
  %135 = vmatmul.mubr.bf16.gmra.mrb[0].mxu0 %v81
  %v136 = vpop.f32.mrb[0].mxu0
  %v137 = vadd.f32 %v45, %v136
  %v138 = vpop.f32.mrb[0].mxu0
  %v139 = vpop.f32.mrb[0].mxu0
  %v140 = vadd.f32 %v45, %v139
  %v141 = vpop.f32.mrb[0].mxu0
  %142 = vmatprep.mubr.bf16.mxu0 0
  %143 = vmatmul.mubr.bf16.gmra.mrb[0].mxu0 %v84
  %v144 = vpop.f32.mrb[0].mxu0
  %v145 = vadd.f32 %v45, %v144
  %v146 = vpop.f32.mrb[0].mxu0
  %v147 = vpop.f32.mrb[0].mxu0
  %v148 = vadd.f32 %v45, %v147
  %v149 = vpop.f32.mrb[0].mxu0
  %150 = vdwg.mxu0
  %151 = vst [vmem:[#allocation2] sm:$0xff] %v121
  %152 = vst [vmem:[#allocation2 + $0x8] sm:$0xff] %v124
  %153 = vst [vmem:[#allocation2 + $0x10] sm:$0xff] %v129
  %154 = vst [vmem:[#allocation2 + $0x18] sm:$0xff] %v132
  %155 = vst [vmem:[#allocation2 + $0x20] sm:$0xff] %v137
  %156 = vst [vmem:[#allocation2 + $0x28] sm:$0xff] %v140
  %157 = vst [vmem:[#allocation2 + $0x30] sm:$0xff] %v145
  %158 = vst [vmem:[#allocation2 + $0x38] sm:$0xff] %v148
  %v159 = vld [vmem:[%s2] sm:$0xff]
  %v160 = vld [vmem:[%s2 + $0x8] sm:$0xff]
  %v161 = vld [vmem:[%s2 + $0x10] sm:$0xff]
  %v162 = vld [vmem:[%s2 + $0x18] sm:$0xff]
  %v163 = vld [vmem:[%s3] sm:$0xf]
  %v164 = vld [vmem:[%s3 + $0x4] sm:$0xf]
  %v165 = vld [vmem:[%s3 + $0x8] sm:$0xf]
  %v166 = vld [vmem:[%s3 + $0xc] sm:$0xf]
  %v167 = vld [vmem:[%s5] sm:$0x1]
  %v169 = vlaneseq
  %v170 = vshrl.u32 %v169, 7
  %v171 = vsub.s32 0, %v170
  %v172 = vrot.slane %v167, %v171
  %v174 = vld [vmem:[#allocation2] sm:$0xff]
  %v175 = vxor.u32 %v174, 2147483648
  %v176 = vmul.f32 %v175, 1.442695
  %v177 = vpow.pop %v176
  %v178 = vadd.f32 %v177, 1.0
  %v179 = vrcp.pop %v178
  %v180 = vmul.f32 1.0, %v179
  %v181 = vtanh.pop %v174
  %v182 = vmul.f32 %v180, 0.0
  %184 = vrot.lane.b32.xlu0 %v181, 64
  %v185 = vpop.permute.xlu0 %184
  %v187 = vmul.f32 %v180, %v185
  %189 = vrot.lane.b32.xlu0 %v187, 32
  %v190 = vpop.permute.xlu0 %189
  %v192 = vadd.f32 %v182, %v190
  %v193 = vtanh.pop %v192
  %195 = vrot.lane.b32.xlu0 %v193, 64
  %v196 = vpop.permute.xlu0 %195
  %v198 = vmul.f32 %v180, %v196
  %v199 = vpack.c.bf16 %v198, %v198
  %201 = vrot.lane.b32.xlu0 %v199, 32
  %v202 = vpop.permute.xlu0 %201
  %v207 = vunpack.c.l.b16 %v159
  %v208 = vunpack.c.h.b16 %v159
  %v209 = vunpack.c.l.b16 %v160
  %v210 = vunpack.c.h.b16 %v160
  %v211 = vunpack.c.l.b16 %v161
  %v212 = vunpack.c.h.b16 %v161
  %v213 = vunpack.c.l.b16 %v162
  %v214 = vunpack.c.h.b16 %v162
  %v215 = vpack.c.b16 %v209, %v207
  %v216 = vpack.c.b16 %v210, %v208
  %v217 = vpack.c.b16 %v213, %v211
  %v218 = vpack.c.b16 %v214, %v212
  %vm223 = vcmask 261120
  %v225 = vsel %vm223, %v202, 0
  %227 = vmatprep.subr.bf16.mxu0 %v216
  %228 = vmatpush1.bf16.msra.mxu0 %v215
  %229 = vmatprep.subr.bf16.mxu0 %v218
  %230 = vmatpush1.bf16.msra.mxu0 %v217
  %231 = vmatprep.subr.bf16.mxu0 0
  %232 = vmatpush1.bf16.msra.mxu0 0
  %233 = vmatprep.subr.bf16.mxu0 0
  %234 = vmatpush1.bf16.msra.mxu0 0
  %235 = vmatprep.subr.bf16.mxu0 0
  %236 = vmatpush1.bf16.msra.mxu0 0
  %237 = vmatprep.subr.bf16.mxu0 0
  %238 = vmatpush1.bf16.msra.mxu0 0
  %239 = vmatprep.subr.bf16.mxu0 0
  %240 = vmatpush1.bf16.msra.mxu0 0
  %241 = vmatprep.subr.bf16.mxu0 0
  %242 = vmatpush1.bf16.msra.mxu0 0
  %243 = vmatprep.subr.bf16.mxu0 0
  %244 = vmatpush1.bf16.msra.mxu0 0
  %245 = vmatprep.subr.bf16.mxu0 0
  %246 = vmatpush1.bf16.msra.mxu0 0
  %247 = vmatprep.subr.bf16.mxu0 0
  %248 = vmatpush1.bf16.msra.mxu0 0
  %249 = vmatprep.subr.bf16.mxu0 0
  %250 = vmatpush1.bf16.msra.mxu0 0
  %251 = vmatprep.subr.bf16.mxu0 0
  %252 = vmatpush1.bf16.msra.mxu0 0
  %253 = vmatprep.subr.bf16.mxu0 0
  %254 = vmatpush1.bf16.msra.mxu0 0
  %255 = vmatprep.subr.bf16.mxu0 0
  %256 = vmatpush1.bf16.msra.mxu0 0
  %257 = vmatprep.subr.bf16.mxu0 0
  %258 = vmatpush1.bf16.msra.mxu0 0
  %259 = vmatprep.mubr.bf16.mxu0 0
  %260 = vmatmul.mubr.bf16.gmra.mrb[0].mxu0 %v225
  %v261 = vpop.f32.mrb[0].mxu0
  %v262 = vadd.f32 0.0, %v261
  %v263 = vpop.f32.mrb[0].mxu0
  %v264 = vadd.f32 0.0, %v263
  %v265 = vpop.f32.mrb[0].mxu0
  %v266 = vpop.f32.mrb[0].mxu0
  %267 = vdwg.mxu0
  %v268 = vadd.f32 %v264, %v172
  %v269 = vxor.u32 %v268, 2147483648
  %v270 = vmul.f32 %v269, 1.442695
  %v271 = vpow.pop %v270
  %v272 = vadd.f32 %v271, 1.0
  %v273 = vrcp.pop %v272
  %v274 = vmul.f32 1.0, %v273
  %v275 = vtanh.pop %v268
  %v276 = vmul.f32 %v274, 0.0
  %278 = vrot.lane.b32.xlu0 %v275, 64
  %v279 = vpop.permute.xlu0 %278
  %v281 = vmul.f32 %v274, %v279
  %283 = vrot.lane.b32.xlu0 %v281, 32
  %v284 = vpop.permute.xlu0 %283
  %v286 = vadd.f32 %v276, %v284
  %v287 = vtanh.pop %v286
  %289 = vrot.lane.b32.xlu0 %v287, 64
  %v290 = vpop.permute.xlu0 %289
  %v292 = vmul.f32 %v274, %v290
  %294 = vrot.lane.b32.xlu0 %v292, 32
  %v295 = vpop.permute.xlu0 %294
  %297 = vst.msk [vmem:[#allocation3] sm:$0xff] %vm223, %v295
  %v298 = vld [vmem:[#allocation2 + $0x8] sm:$0xff]
  %v299 = vadd.f32 %v298, %v262
  %v300 = vxor.u32 %v299, 2147483648
  %v301 = vmul.f32 %v300, 1.442695
  %v302 = vpow.pop %v301
  %v303 = vadd.f32 %v302, 1.0
  %v304 = vrcp.pop %v303
  %v305 = vmul.f32 1.0, %v304
  %v306 = vtanh.pop %v299
  %v307 = vmul.f32 %v305, %v192
  %309 = vrot.lane.b32.xlu0 %v306, 64
  %v310 = vpop.permute.xlu0 %309
  %v312 = vmul.f32 %v305, %v310
  %314 = vrot.lane.b32.xlu0 %v312, 32
  %v315 = vpop.permute.xlu0 %314
  %v317 = vadd.f32 %v307, %v315
  %v318 = vtanh.pop %v317
  %320 = vrot.lane.b32.xlu0 %v318, 64
  %v321 = vpop.permute.xlu0 %320
  %v323 = vmul.f32 %v305, %v321
  %v324 = vpack.c.bf16 %v323, %v323
  %326 = vrot.lane.b32.xlu0 %v324, 32
  %v327 = vpop.permute.xlu0 %326
  %v329 = vsel %vm223, %v327, 0
  %331 = vmatprep.subr.bf16.mxu0 %v216
  %332 = vmatpush1.bf16.msra.mxu0 %v215
  %333 = vmatprep.subr.bf16.mxu0 %v218
  %334 = vmatpush1.bf16.msra.mxu0 %v217
  %335 = vmatprep.subr.bf16.mxu0 0
  %336 = vmatpush1.bf16.msra.mxu0 0
  %337 = vmatprep.subr.bf16.mxu0 0
  %338 = vmatpush1.bf16.msra.mxu0 0
  %339 = vmatprep.subr.bf16.mxu0 0
  %340 = vmatpush1.bf16.msra.mxu0 0
  %341 = vmatprep.subr.bf16.mxu0 0
  %342 = vmatpush1.bf16.msra.mxu0 0
  %343 = vmatprep.subr.bf16.mxu0 0
  %344 = vmatpush1.bf16.msra.mxu0 0
  %345 = vmatprep.subr.bf16.mxu0 0
  %346 = vmatpush1.bf16.msra.mxu0 0
  %347 = vmatprep.subr.bf16.mxu0 0
  %348 = vmatpush1.bf16.msra.mxu0 0
  %349 = vmatprep.subr.bf16.mxu0 0
  %350 = vmatpush1.bf16.msra.mxu0 0
  %351 = vmatprep.subr.bf16.mxu0 0
  %352 = vmatpush1.bf16.msra.mxu0 0
  %353 = vmatprep.subr.bf16.mxu0 0
  %354 = vmatpush1.bf16.msra.mxu0 0
  %355 = vmatprep.subr.bf16.mxu0 0
  %356 = vmatpush1.bf16.msra.mxu0 0
  %357 = vmatprep.subr.bf16.mxu0 0
  %358 = vmatpush1.bf16.msra.mxu0 0
  %359 = vmatprep.subr.bf16.mxu0 0
  %360 = vmatpush1.bf16.msra.mxu0 0
  %361 = vmatprep.subr.bf16.mxu0 0
  %362 = vmatpush1.bf16.msra.mxu0 0
  %363 = vmatprep.mubr.bf16.mxu0 0
  %364 = vmatmul.mubr.bf16.gmra.mrb[0].mxu0 %v329
  %v365 = vpop.f32.mrb[0].mxu0
  %v366 = vadd.f32 0.0, %v365
  %v367 = vpop.f32.mrb[0].mxu0
  %v368 = vadd.f32 0.0, %v367
  %v369 = vpop.f32.mrb[0].mxu0
  %v370 = vpop.f32.mrb[0].mxu0
  %371 = vdwg.mxu0
  %v372 = vadd.f32 %v368, %v172
  %v373 = vpack.c.bf16 %v292, %v292
  %375 = vrot.lane.b32.xlu0 %v373, 32
  %v376 = vpop.permute.xlu0 %375
  %v381 = vunpack.c.l.b16 %v163
  %v382 = vunpack.c.l.b16 %v164
  %v383 = vunpack.c.l.b16 %v165
  %v384 = vunpack.c.l.b16 %v166
  %v385 = vpack.c.b16 %v382, %v381
  %v386 = vpack.c.b16 %v384, %v383
  %v390 = vsel %vm223, %v376, 0
  %392 = vmatprep.subr.bf16.mxu0 0
  %393 = vmatpush1.bf16.msra.mxu0 %v385
  %394 = vmatprep.subr.bf16.mxu0 0
  %395 = vmatpush1.bf16.msra.mxu0 %v386
  %396 = vmatprep.subr.bf16.mxu0 0
  %397 = vmatpush1.bf16.msra.mxu0 0
  %398 = vmatprep.subr.bf16.mxu0 0
  %399 = vmatpush1.bf16.msra.mxu0 0
  %400 = vmatprep.subr.bf16.mxu0 0
  %401 = vmatpush1.bf16.msra.mxu0 0
  %402 = vmatprep.subr.bf16.mxu0 0
  %403 = vmatpush1.bf16.msra.mxu0 0
  %404 = vmatprep.subr.bf16.mxu0 0
  %405 = vmatpush1.bf16.msra.mxu0 0
  %406 = vmatprep.subr.bf16.mxu0 0
  %407 = vmatpush1.bf16.msra.mxu0 0
  %408 = vmatprep.subr.bf16.mxu0 0
  %409 = vmatpush1.bf16.msra.mxu0 0
  %410 = vmatprep.subr.bf16.mxu0 0
  %411 = vmatpush1.bf16.msra.mxu0 0
  %412 = vmatprep.subr.bf16.mxu0 0
  %413 = vmatpush1.bf16.msra.mxu0 0
  %414 = vmatprep.subr.bf16.mxu0 0
  %415 = vmatpush1.bf16.msra.mxu0 0
  %416 = vmatprep.subr.bf16.mxu0 0
  %417 = vmatpush1.bf16.msra.mxu0 0
  %418 = vmatprep.subr.bf16.mxu0 0
  %419 = vmatpush1.bf16.msra.mxu0 0
  %420 = vmatprep.subr.bf16.mxu0 0
  %421 = vmatpush1.bf16.msra.mxu0 0
  %422 = vmatprep.subr.bf16.mxu0 0
  %423 = vmatpush1.bf16.msra.mxu0 0
  %424 = vmatprep.mubr.bf16.mxu0 0
  %425 = vmatmul.mubr.bf16.gmra.mrb[0].mxu0 %v390
  %v426 = vpop.f32.mrb[0].mxu0
  %v427 = vadd.f32 0.0, %v426
  %v428 = vpop.f32.mrb[0].mxu0
  %v429 = vpop.f32.mrb[0].mxu0
  %v430 = vpop.f32.mrb[0].mxu0
  %431 = vdwg.mxu0
  %v432 = vadd.f32 %v372, %v427
  %v433 = vxor.u32 %v432, 2147483648
  %v434 = vmul.f32 %v433, 1.442695
  %v435 = vpow.pop %v434
  %v436 = vadd.f32 %v435, 1.0
  %v437 = vrcp.pop %v436
  %v438 = vmul.f32 1.0, %v437
  %v439 = vtanh.pop %v432
  %v440 = vmul.f32 %v438, %v286
  %442 = vrot.lane.b32.xlu0 %v439, 64
  %v443 = vpop.permute.xlu0 %442
  %v445 = vmul.f32 %v438, %v443
  %447 = vrot.lane.b32.xlu0 %v445, 32
  %v448 = vpop.permute.xlu0 %447
  %v450 = vadd.f32 %v440, %v448
  %v451 = vtanh.pop %v450
  %453 = vrot.lane.b32.xlu0 %v451, 64
  %v454 = vpop.permute.xlu0 %453
  %v456 = vmul.f32 %v438, %v454
  %458 = vrot.lane.b32.xlu0 %v456, 32
  %v459 = vpop.permute.xlu0 %458
  %461 = vst.msk [vmem:[#allocation3 + $0x8] sm:$0xff] %vm223, %v459
  %v462 = vld [vmem:[#allocation2 + $0x10] sm:$0xff]
  %v463 = vadd.f32 %v462, %v366
  %v464 = vxor.u32 %v463, 2147483648
  %v465 = vmul.f32 %v464, 1.442695
  %v466 = vpow.pop %v465
  %v467 = vadd.f32 %v466, 1.0
  %v468 = vrcp.pop %v467
  %v469 = vmul.f32 1.0, %v468
  %v470 = vtanh.pop %v463
  %v471 = vmul.f32 %v469, %v317
  %473 = vrot.lane.b32.xlu0 %v470, 64
  %v474 = vpop.permute.xlu0 %473
  %v476 = vmul.f32 %v469, %v474
  %478 = vrot.lane.b32.xlu0 %v476, 32
  %v479 = vpop.permute.xlu0 %478
  %v481 = vadd.f32 %v471, %v479
  %v482 = vtanh.pop %v481
  %484 = vrot.lane.b32.xlu0 %v482, 64
  %v485 = vpop.permute.xlu0 %484
  %v487 = vmul.f32 %v469, %v485
  %v488 = vpack.c.bf16 %v487, %v487
  %490 = vrot.lane.b32.xlu0 %v488, 32
  %v491 = vpop.permute.xlu0 %490
  %v493 = vsel %vm223, %v491, 0
  %495 = vmatprep.subr.bf16.mxu0 %v216
  %496 = vmatpush1.bf16.msra.mxu0 %v215
  %497 = vmatprep.subr.bf16.mxu0 %v218
  %498 = vmatpush1.bf16.msra.mxu0 %v217
  %499 = vmatprep.subr.bf16.mxu0 0
  %500 = vmatpush1.bf16.msra.mxu0 0
  %501 = vmatprep.subr.bf16.mxu0 0
  %502 = vmatpush1.bf16.msra.mxu0 0
  %503 = vmatprep.subr.bf16.mxu0 0
  %504 = vmatpush1.bf16.msra.mxu0 0
  %505 = vmatprep.subr.bf16.mxu0 0
  %506 = vmatpush1.bf16.msra.mxu0 0
  %507 = vmatprep.subr.bf16.mxu0 0
  %508 = vmatpush1.bf16.msra.mxu0 0
  %509 = vmatprep.subr.bf16.mxu0 0
  %510 = vmatpush1.bf16.msra.mxu0 0
  %511 = vmatprep.subr.bf16.mxu0 0
  %512 = vmatpush1.bf16.msra.mxu0 0
  %513 = vmatprep.subr.bf16.mxu0 0
  %514 = vmatpush1.bf16.msra.mxu0 0
  %515 = vmatprep.subr.bf16.mxu0 0
  %516 = vmatpush1.bf16.msra.mxu0 0
  %517 = vmatprep.subr.bf16.mxu0 0
  %518 = vmatpush1.bf16.msra.mxu0 0
  %519 = vmatprep.subr.bf16.mxu0 0
  %520 = vmatpush1.bf16.msra.mxu0 0
  %521 = vmatprep.subr.bf16.mxu0 0
  %522 = vmatpush1.bf16.msra.mxu0 0
  %523 = vmatprep.subr.bf16.mxu0 0
  %524 = vmatpush1.bf16.msra.mxu0 0
  %525 = vmatprep.subr.bf16.mxu0 0
  %526 = vmatpush1.bf16.msra.mxu0 0
  %527 = vmatprep.mubr.bf16.mxu0 0
  %528 = vmatmul.mubr.bf16.gmra.mrb[0].mxu0 %v493
  %v529 = vpop.f32.mrb[0].mxu0
  %v530 = vadd.f32 0.0, %v529
  %v531 = vpop.f32.mrb[0].mxu0
  %v532 = vadd.f32 0.0, %v531
  %v533 = vpop.f32.mrb[0].mxu0
  %v534 = vpop.f32.mrb[0].mxu0
  %535 = vdwg.mxu0
  %v536 = vadd.f32 %v532, %v172
  %v537 = vpack.c.bf16 %v456, %v456
  %539 = vrot.lane.b32.xlu0 %v537, 32
  %v540 = vpop.permute.xlu0 %539
  %v542 = vsel %vm223, %v540, 0
  %544 = vmatprep.subr.bf16.mxu0 0
  %545 = vmatpush1.bf16.msra.mxu0 %v385
  %546 = vmatprep.subr.bf16.mxu0 0
  %547 = vmatpush1.bf16.msra.mxu0 %v386
  %548 = vmatprep.subr.bf16.mxu0 0
  %549 = vmatpush1.bf16.msra.mxu0 0
  %550 = vmatprep.subr.bf16.mxu0 0
  %551 = vmatpush1.bf16.msra.mxu0 0
  %552 = vmatprep.subr.bf16.mxu0 0
  %553 = vmatpush1.bf16.msra.mxu0 0
  %554 = vmatprep.subr.bf16.mxu0 0
  %555 = vmatpush1.bf16.msra.mxu0 0
  %556 = vmatprep.subr.bf16.mxu0 0
  %557 = vmatpush1.bf16.msra.mxu0 0
  %558 = vmatprep.subr.bf16.mxu0 0
  %559 = vmatpush1.bf16.msra.mxu0 0
  %560 = vmatprep.subr.bf16.mxu0 0
  %561 = vmatpush1.bf16.msra.mxu0 0
  %562 = vmatprep.subr.bf16.mxu0 0
  %563 = vmatpush1.bf16.msra.mxu0 0
  %564 = vmatprep.subr.bf16.mxu0 0
  %565 = vmatpush1.bf16.msra.mxu0 0
  %566 = vmatprep.subr.bf16.mxu0 0
  %567 = vmatpush1.bf16.msra.mxu0 0
  %568 = vmatprep.subr.bf16.mxu0 0
  %569 = vmatpush1.bf16.msra.mxu0 0
  %570 = vmatprep.subr.bf16.mxu0 0
  %571 = vmatpush1.bf16.msra.mxu0 0
  %572 = vmatprep.subr.bf16.mxu0 0
  %573 = vmatpush1.bf16.msra.mxu0 0
  %574 = vmatprep.subr.bf16.mxu0 0
  %575 = vmatpush1.bf16.msra.mxu0 0
  %576 = vmatprep.mubr.bf16.mxu0 0
  %577 = vmatmul.mubr.bf16.gmra.mrb[0].mxu0 %v542
  %v578 = vpop.f32.mrb[0].mxu0
  %v579 = vadd.f32 0.0, %v578
  %v580 = vpop.f32.mrb[0].mxu0
  %v581 = vpop.f32.mrb[0].mxu0
  %v582 = vpop.f32.mrb[0].mxu0
  %583 = vdwg.mxu0
  %v584 = vadd.f32 %v536, %v579
  %v585 = vxor.u32 %v584, 2147483648
  %v586 = vmul.f32 %v585, 1.442695
  %v587 = vpow.pop %v586
  %v588 = vadd.f32 %v587, 1.0
  %v589 = vrcp.pop %v588
  %v590 = vmul.f32 1.0, %v589
  %v591 = vtanh.pop %v584
  %v592 = vmul.f32 %v590, %v450
  %594 = vrot.lane.b32.xlu0 %v591, 64
  %v595 = vpop.permute.xlu0 %594
  %v597 = vmul.f32 %v590, %v595
  %599 = vrot.lane.b32.xlu0 %v597, 32
  %v600 = vpop.permute.xlu0 %599
  %v602 = vadd.f32 %v592, %v600
  %v603 = vtanh.pop %v602
  %605 = vrot.lane.b32.xlu0 %v603, 64
  %v606 = vpop.permute.xlu0 %605
  %v608 = vmul.f32 %v590, %v606
  %610 = vrot.lane.b32.xlu0 %v608, 32
  %v611 = vpop.permute.xlu0 %610
  %613 = vst.msk [vmem:[#allocation3 + $0x10] sm:$0xff] %vm223, %v611
  %v614 = vld [vmem:[#allocation2 + $0x18] sm:$0xff]
  %v615 = vadd.f32 %v614, %v530
  %v616 = vxor.u32 %v615, 2147483648
  %v617 = vmul.f32 %v616, 1.442695
  %v618 = vpow.pop %v617
  %v619 = vadd.f32 %v618, 1.0
  %v620 = vrcp.pop %v619
  %v621 = vmul.f32 1.0, %v620
  %v622 = vtanh.pop %v615
  %v623 = vmul.f32 %v621, %v481
  %625 = vrot.lane.b32.xlu0 %v622, 64
  %v626 = vpop.permute.xlu0 %625
  %v628 = vmul.f32 %v621, %v626
  %630 = vrot.lane.b32.xlu0 %v628, 32
  %v631 = vpop.permute.xlu0 %630
  %v633 = vadd.f32 %v623, %v631
  %v634 = vtanh.pop %v633
  %636 = vrot.lane.b32.xlu0 %v634, 64
  %v637 = vpop.permute.xlu0 %636
  %v639 = vmul.f32 %v621, %v637
  %v640 = vpack.c.bf16 %v639, %v639
  %642 = vrot.lane.b32.xlu0 %v640, 32
  %v643 = vpop.permute.xlu0 %642
  %v645 = vsel %vm223, %v643, 0
  %647 = vmatprep.subr.bf16.mxu0 %v216
  %648 = vmatpush1.bf16.msra.mxu0 %v215
  %649 = vmatprep.subr.bf16.mxu0 %v218
  %650 = vmatpush1.bf16.msra.mxu0 %v217
  %651 = vmatprep.subr.bf16.mxu0 0
  %652 = vmatpush1.bf16.msra.mxu0 0
  %653 = vmatprep.subr.bf16.mxu0 0
  %654 = vmatpush1.bf16.msra.mxu0 0
  %655 = vmatprep.subr.bf16.mxu0 0
  %656 = vmatpush1.bf16.msra.mxu0 0
  %657 = vmatprep.subr.bf16.mxu0 0
  %658 = vmatpush1.bf16.msra.mxu0 0
  %659 = vmatprep.subr.bf16.mxu0 0
  %660 = vmatpush1.bf16.msra.mxu0 0
  %661 = vmatprep.subr.bf16.mxu0 0
  %662 = vmatpush1.bf16.msra.mxu0 0
  %663 = vmatprep.subr.bf16.mxu0 0
  %664 = vmatpush1.bf16.msra.mxu0 0
  %665 = vmatprep.subr.bf16.mxu0 0
  %666 = vmatpush1.bf16.msra.mxu0 0
  %667 = vmatprep.subr.bf16.mxu0 0
  %668 = vmatpush1.bf16.msra.mxu0 0
  %669 = vmatprep.subr.bf16.mxu0 0
  %670 = vmatpush1.bf16.msra.mxu0 0
  %671 = vmatprep.subr.bf16.mxu0 0
  %672 = vmatpush1.bf16.msra.mxu0 0
  %673 = vmatprep.subr.bf16.mxu0 0
  %674 = vmatpush1.bf16.msra.mxu0 0
  %675 = vmatprep.subr.bf16.mxu0 0
  %676 = vmatpush1.bf16.msra.mxu0 0
  %677 = vmatprep.subr.bf16.mxu0 0
  %678 = vmatpush1.bf16.msra.mxu0 0
  %679 = vmatprep.mubr.bf16.mxu0 0
  %680 = vmatmul.mubr.bf16.gmra.mrb[0].mxu0 %v645
  %v681 = vpop.f32.mrb[0].mxu0
  %v682 = vadd.f32 0.0, %v681
  %v683 = vpop.f32.mrb[0].mxu0
  %v684 = vadd.f32 0.0, %v683
  %v685 = vpop.f32.mrb[0].mxu0
  %v686 = vpop.f32.mrb[0].mxu0
  %687 = vdwg.mxu0
  %v688 = vadd.f32 %v684, %v172
  %v689 = vpack.c.bf16 %v608, %v608
  %691 = vrot.lane.b32.xlu0 %v689, 32
  %v692 = vpop.permute.xlu0 %691
  %v694 = vsel %vm223, %v692, 0
  %696 = vmatprep.subr.bf16.mxu0 0
  %697 = vmatpush1.bf16.msra.mxu0 %v385
  %698 = vmatprep.subr.bf16.mxu0 0
  %699 = vmatpush1.bf16.msra.mxu0 %v386
  %700 = vmatprep.subr.bf16.mxu0 0
  %701 = vmatpush1.bf16.msra.mxu0 0
  %702 = vmatprep.subr.bf16.mxu0 0
  %703 = vmatpush1.bf16.msra.mxu0 0
  %704 = vmatprep.subr.bf16.mxu0 0
  %705 = vmatpush1.bf16.msra.mxu0 0
  %706 = vmatprep.subr.bf16.mxu0 0
  %707 = vmatpush1.bf16.msra.mxu0 0
  %708 = vmatprep.subr.bf16.mxu0 0
  %709 = vmatpush1.bf16.msra.mxu0 0
  %710 = vmatprep.subr.bf16.mxu0 0
  %711 = vmatpush1.bf16.msra.mxu0 0
  %712 = vmatprep.subr.bf16.mxu0 0
  %713 = vmatpush1.bf16.msra.mxu0 0
  %714 = vmatprep.subr.bf16.mxu0 0
  %715 = vmatpush1.bf16.msra.mxu0 0
  %716 = vmatprep.subr.bf16.mxu0 0
  %717 = vmatpush1.bf16.msra.mxu0 0
  %718 = vmatprep.subr.bf16.mxu0 0
  %719 = vmatpush1.bf16.msra.mxu0 0
  %720 = vmatprep.subr.bf16.mxu0 0
  %721 = vmatpush1.bf16.msra.mxu0 0
  %722 = vmatprep.subr.bf16.mxu0 0
  %723 = vmatpush1.bf16.msra.mxu0 0
  %724 = vmatprep.subr.bf16.mxu0 0
  %725 = vmatpush1.bf16.msra.mxu0 0
  %726 = vmatprep.subr.bf16.mxu0 0
  %727 = vmatpush1.bf16.msra.mxu0 0
  %728 = vmatprep.mubr.bf16.mxu0 0
  %729 = vmatmul.mubr.bf16.gmra.mrb[0].mxu0 %v694
  %v730 = vpop.f32.mrb[0].mxu0
  %v731 = vadd.f32 0.0, %v730
  %v732 = vpop.f32.mrb[0].mxu0
  %v733 = vpop.f32.mrb[0].mxu0
  %v734 = vpop.f32.mrb[0].mxu0
  %735 = vdwg.mxu0
  %v736 = vadd.f32 %v688, %v731
  %v737 = vxor.u32 %v736, 2147483648
  %v738 = vmul.f32 %v737, 1.442695
  %v739 = vpow.pop %v738
  %v740 = vadd.f32 %v739, 1.0
  %v741 = vrcp.pop %v740
  %v742 = vmul.f32 1.0, %v741
  %v743 = vtanh.pop %v736
  %v744 = vmul.f32 %v742, %v602
  %746 = vrot.lane.b32.xlu0 %v743, 64
  %v747 = vpop.permute.xlu0 %746
  %v749 = vmul.f32 %v742, %v747
  %751 = vrot.lane.b32.xlu0 %v749, 32
  %v752 = vpop.permute.xlu0 %751
  %v754 = vadd.f32 %v744, %v752
  %v755 = vtanh.pop %v754
  %757 = vrot.lane.b32.xlu0 %v755, 64
  %v758 = vpop.permute.xlu0 %757
  %v760 = vmul.f32 %v742, %v758
  %762 = vrot.lane.b32.xlu0 %v760, 32
  %v763 = vpop.permute.xlu0 %762
  %765 = vst.msk [vmem:[#allocation3 + $0x18] sm:$0xff] %vm223, %v763
  %v766 = vld [vmem:[#allocation2 + $0x20] sm:$0xff]
  %v767 = vadd.f32 %v766, %v682
  %v768 = vxor.u32 %v767, 2147483648
  %v769 = vmul.f32 %v768, 1.442695
  %v770 = vpow.pop %v769
  %v771 = vadd.f32 %v770, 1.0
  %v772 = vrcp.pop %v771
  %v773 = vmul.f32 1.0, %v772
  %v774 = vtanh.pop %v767
  %v775 = vmul.f32 %v773, %v633
  %777 = vrot.lane.b32.xlu0 %v774, 64
  %v778 = vpop.permute.xlu0 %777
  %v780 = vmul.f32 %v773, %v778
  %782 = vrot.lane.b32.xlu0 %v780, 32
  %v783 = vpop.permute.xlu0 %782
  %v785 = vadd.f32 %v775, %v783
  %v786 = vtanh.pop %v785
  %788 = vrot.lane.b32.xlu0 %v786, 64
  %v789 = vpop.permute.xlu0 %788
  %v791 = vmul.f32 %v773, %v789
  %v792 = vpack.c.bf16 %v791, %v791
  %794 = vrot.lane.b32.xlu0 %v792, 32
  %v795 = vpop.permute.xlu0 %794
  %v797 = vsel %vm223, %v795, 0
  %799 = vmatprep.subr.bf16.mxu0 %v216
  %800 = vmatpush1.bf16.msra.mxu0 %v215
  %801 = vmatprep.subr.bf16.mxu0 %v218
  %802 = vmatpush1.bf16.msra.mxu0 %v217
  %803 = vmatprep.subr.bf16.mxu0 0
  %804 = vmatpush1.bf16.msra.mxu0 0
  %805 = vmatprep.subr.bf16.mxu0 0
  %806 = vmatpush1.bf16.msra.mxu0 0
  %807 = vmatprep.subr.bf16.mxu0 0
  %808 = vmatpush1.bf16.msra.mxu0 0
  %809 = vmatprep.subr.bf16.mxu0 0
  %810 = vmatpush1.bf16.msra.mxu0 0
  %811 = vmatprep.subr.bf16.mxu0 0
  %812 = vmatpush1.bf16.msra.mxu0 0
  %813 = vmatprep.subr.bf16.mxu0 0
  %814 = vmatpush1.bf16.msra.mxu0 0
  %815 = vmatprep.subr.bf16.mxu0 0
  %816 = vmatpush1.bf16.msra.mxu0 0
  %817 = vmatprep.subr.bf16.mxu0 0
  %818 = vmatpush1.bf16.msra.mxu0 0
  %819 = vmatprep.subr.bf16.mxu0 0
  %820 = vmatpush1.bf16.msra.mxu0 0
  %821 = vmatprep.subr.bf16.mxu0 0
  %822 = vmatpush1.bf16.msra.mxu0 0
  %823 = vmatprep.subr.bf16.mxu0 0
  %824 = vmatpush1.bf16.msra.mxu0 0
  %825 = vmatprep.subr.bf16.mxu0 0
  %826 = vmatpush1.bf16.msra.mxu0 0
  %827 = vmatprep.subr.bf16.mxu0 0
  %828 = vmatpush1.bf16.msra.mxu0 0
  %829 = vmatprep.subr.bf16.mxu0 0
  %830 = vmatpush1.bf16.msra.mxu0 0
  %831 = vmatprep.mubr.bf16.mxu0 0
  %832 = vmatmul.mubr.bf16.gmra.mrb[0].mxu0 %v797
  %v833 = vpop.f32.mrb[0].mxu0
  %v834 = vadd.f32 0.0, %v833
  %v835 = vpop.f32.mrb[0].mxu0
  %v836 = vadd.f32 0.0, %v835
  %v837 = vpop.f32.mrb[0].mxu0
  %v838 = vpop.f32.mrb[0].mxu0
  %839 = vdwg.mxu0
  %v840 = vadd.f32 %v836, %v172
  %v841 = vpack.c.bf16 %v760, %v760
  %843 = vrot.lane.b32.xlu0 %v841, 32
  %v844 = vpop.permute.xlu0 %843
  %v846 = vsel %vm223, %v844, 0
  %848 = vmatprep.subr.bf16.mxu0 0
  %849 = vmatpush1.bf16.msra.mxu0 %v385
  %850 = vmatprep.subr.bf16.mxu0 0
  %851 = vmatpush1.bf16.msra.mxu0 %v386
  %852 = vmatprep.subr.bf16.mxu0 0
  %853 = vmatpush1.bf16.msra.mxu0 0
  %854 = vmatprep.subr.bf16.mxu0 0
  %855 = vmatpush1.bf16.msra.mxu0 0
  %856 = vmatprep.subr.bf16.mxu0 0
  %857 = vmatpush1.bf16.msra.mxu0 0
  %858 = vmatprep.subr.bf16.mxu0 0
  %859 = vmatpush1.bf16.msra.mxu0 0
  %860 = vmatprep.subr.bf16.mxu0 0
  %861 = vmatpush1.bf16.msra.mxu0 0
  %862 = vmatprep.subr.bf16.mxu0 0
  %863 = vmatpush1.bf16.msra.mxu0 0
  %864 = vmatprep.subr.bf16.mxu0 0
  %865 = vmatpush1.bf16.msra.mxu0 0
  %866 = vmatprep.subr.bf16.mxu0 0
  %867 = vmatpush1.bf16.msra.mxu0 0
  %868 = vmatprep.subr.bf16.mxu0 0
  %869 = vmatpush1.bf16.msra.mxu0 0
  %870 = vmatprep.subr.bf16.mxu0 0
  %871 = vmatpush1.bf16.msra.mxu0 0
  %872 = vmatprep.subr.bf16.mxu0 0
  %873 = vmatpush1.bf16.msra.mxu0 0
  %874 = vmatprep.subr.bf16.mxu0 0
  %875 = vmatpush1.bf16.msra.mxu0 0
  %876 = vmatprep.subr.bf16.mxu0 0
  %877 = vmatpush1.bf16.msra.mxu0 0
  %878 = vmatprep.subr.bf16.mxu0 0
  %879 = vmatpush1.bf16.msra.mxu0 0
  %880 = vmatprep.mubr.bf16.mxu0 0
  %881 = vmatmul.mubr.bf16.gmra.mrb[0].mxu0 %v846
  %v882 = vpop.f32.mrb[0].mxu0
  %v883 = vadd.f32 0.0, %v882
  %v884 = vpop.f32.mrb[0].mxu0
  %v885 = vpop.f32.mrb[0].mxu0
  %v886 = vpop.f32.mrb[0].mxu0
  %887 = vdwg.mxu0
  %v888 = vadd.f32 %v840, %v883
  %v889 = vxor.u32 %v888, 2147483648
  %v890 = vmul.f32 %v889, 1.442695
  %v891 = vpow.pop %v890
  %v892 = vadd.f32 %v891, 1.0
  %v893 = vrcp.pop %v892
  %v894 = vmul.f32 1.0, %v893
  %v895 = vtanh.pop %v888
  %v896 = vmul.f32 %v894, %v754
  %898 = vrot.lane.b32.xlu0 %v895, 64
  %v899 = vpop.permute.xlu0 %898
  %v901 = vmul.f32 %v894, %v899
  %903 = vrot.lane.b32.xlu0 %v901, 32
  %v904 = vpop.permute.xlu0 %903
  %v906 = vadd.f32 %v896, %v904
  %v907 = vtanh.pop %v906
  %909 = vrot.lane.b32.xlu0 %v907, 64
  %v910 = vpop.permute.xlu0 %909
  %v912 = vmul.f32 %v894, %v910
  %914 = vrot.lane.b32.xlu0 %v912, 32
  %v915 = vpop.permute.xlu0 %914
  %917 = vst.msk [vmem:[#allocation3 + $0x20] sm:$0xff] %vm223, %v915
  %v918 = vld [vmem:[#allocation2 + $0x28] sm:$0xff]
  %v919 = vadd.f32 %v918, %v834
  %v920 = vxor.u32 %v919, 2147483648
  %v921 = vmul.f32 %v920, 1.442695
  %v922 = vpow.pop %v921
  %v923 = vadd.f32 %v922, 1.0
  %v924 = vrcp.pop %v923
  %v925 = vmul.f32 1.0, %v924
  %v926 = vtanh.pop %v919
  %v927 = vmul.f32 %v925, %v785
  %929 = vrot.lane.b32.xlu0 %v926, 64
  %v930 = vpop.permute.xlu0 %929
  %v932 = vmul.f32 %v925, %v930
  %934 = vrot.lane.b32.xlu0 %v932, 32
  %v935 = vpop.permute.xlu0 %934
  %v937 = vadd.f32 %v927, %v935
  %v938 = vtanh.pop %v937
  %940 = vrot.lane.b32.xlu0 %v938, 64
  %v941 = vpop.permute.xlu0 %940
  %v943 = vmul.f32 %v925, %v941
  %v944 = vpack.c.bf16 %v943, %v943
  %946 = vrot.lane.b32.xlu0 %v944, 32
  %v947 = vpop.permute.xlu0 %946
  %v949 = vsel %vm223, %v947, 0
  %951 = vmatprep.subr.bf16.mxu0 %v216
  %952 = vmatpush1.bf16.msra.mxu0 %v215
  %953 = vmatprep.subr.bf16.mxu0 %v218
  %954 = vmatpush1.bf16.msra.mxu0 %v217
  %955 = vmatprep.subr.bf16.mxu0 0
  %956 = vmatpush1.bf16.msra.mxu0 0
  %957 = vmatprep.subr.bf16.mxu0 0
  %958 = vmatpush1.bf16.msra.mxu0 0
  %959 = vmatprep.subr.bf16.mxu0 0
  %960 = vmatpush1.bf16.msra.mxu0 0
  %961 = vmatprep.subr.bf16.mxu0 0
  %962 = vmatpush1.bf16.msra.mxu0 0
  %963 = vmatprep.subr.bf16.mxu0 0
  %964 = vmatpush1.bf16.msra.mxu0 0
  %965 = vmatprep.subr.bf16.mxu0 0
  %966 = vmatpush1.bf16.msra.mxu0 0
  %967 = vmatprep.subr.bf16.mxu0 0
  %968 = vmatpush1.bf16.msra.mxu0 0
  %969 = vmatprep.subr.bf16.mxu0 0
  %970 = vmatpush1.bf16.msra.mxu0 0
  %971 = vmatprep.subr.bf16.mxu0 0
  %972 = vmatpush1.bf16.msra.mxu0 0
  %973 = vmatprep.subr.bf16.mxu0 0
  %974 = vmatpush1.bf16.msra.mxu0 0
  %975 = vmatprep.subr.bf16.mxu0 0
  %976 = vmatpush1.bf16.msra.mxu0 0
  %977 = vmatprep.subr.bf16.mxu0 0
  %978 = vmatpush1.bf16.msra.mxu0 0
  %979 = vmatprep.subr.bf16.mxu0 0
  %980 = vmatpush1.bf16.msra.mxu0 0
  %981 = vmatprep.subr.bf16.mxu0 0
  %982 = vmatpush1.bf16.msra.mxu0 0
  %983 = vmatprep.mubr.bf16.mxu0 0
  %984 = vmatmul.mubr.bf16.gmra.mrb[0].mxu0 %v949
  %v985 = vpop.f32.mrb[0].mxu0
  %v986 = vadd.f32 0.0, %v985
  %v987 = vpop.f32.mrb[0].mxu0
  %v988 = vadd.f32 0.0, %v987
  %v989 = vpop.f32.mrb[0].mxu0
  %v990 = vpop.f32.mrb[0].mxu0
  %991 = vdwg.mxu0
  %v992 = vadd.f32 %v988, %v172
  %v993 = vpack.c.bf16 %v912, %v912
  %995 = vrot.lane.b32.xlu0 %v993, 32
  %v996 = vpop.permute.xlu0 %995
  %v998 = vsel %vm223, %v996, 0
  %1000 = vmatprep.subr.bf16.mxu0 0
  %1001 = vmatpush1.bf16.msra.mxu0 %v385
  %1002 = vmatprep.subr.bf16.mxu0 0
  %1003 = vmatpush1.bf16.msra.mxu0 %v386
  %1004 = vmatprep.subr.bf16.mxu0 0
  %1005 = vmatpush1.bf16.msra.mxu0 0
  %1006 = vmatprep.subr.bf16.mxu0 0
  %1007 = vmatpush1.bf16.msra.mxu0 0
  %1008 = vmatprep.subr.bf16.mxu0 0
  %1009 = vmatpush1.bf16.msra.mxu0 0
  %1010 = vmatprep.subr.bf16.mxu0 0
  %1011 = vmatpush1.bf16.msra.mxu0 0
  %1012 = vmatprep.subr.bf16.mxu0 0
  %1013 = vmatpush1.bf16.msra.mxu0 0
  %1014 = vmatprep.subr.bf16.mxu0 0
  %1015 = vmatpush1.bf16.msra.mxu0 0
  %1016 = vmatprep.subr.bf16.mxu0 0
  %1017 = vmatpush1.bf16.msra.mxu0 0
  %1018 = vmatprep.subr.bf16.mxu0 0
  %1019 = vmatpush1.bf16.msra.mxu0 0
  %1020 = vmatprep.subr.bf16.mxu0 0
  %1021 = vmatpush1.bf16.msra.mxu0 0
  %1022 = vmatprep.subr.bf16.mxu0 0
  %1023 = vmatpush1.bf16.msra.mxu0 0
  %1024 = vmatprep.subr.bf16.mxu0 0
  %1025 = vmatpush1.bf16.msra.mxu0 0
  %1026 = vmatprep.subr.bf16.mxu0 0
  %1027 = vmatpush1.bf16.msra.mxu0 0
  %1028 = vmatprep.subr.bf16.mxu0 0
  %1029 = vmatpush1.bf16.msra.mxu0 0
  %1030 = vmatprep.subr.bf16.mxu0 0
  %1031 = vmatpush1.bf16.msra.mxu0 0
  %1032 = vmatprep.mubr.bf16.mxu0 0
  %1033 = vmatmul.mubr.bf16.gmra.mrb[0].mxu0 %v998
  %v1034 = vpop.f32.mrb[0].mxu0
  %v1035 = vadd.f32 0.0, %v1034
  %v1036 = vpop.f32.mrb[0].mxu0
  %v1037 = vpop.f32.mrb[0].mxu0
  %v1038 = vpop.f32.mrb[0].mxu0
  %1039 = vdwg.mxu0
  %v1040 = vadd.f32 %v992, %v1035
  %v1041 = vxor.u32 %v1040, 2147483648
  %v1042 = vmul.f32 %v1041, 1.442695
  %v1043 = vpow.pop %v1042
  %v1044 = vadd.f32 %v1043, 1.0
  %v1045 = vrcp.pop %v1044
  %v1046 = vmul.f32 1.0, %v1045
  %v1047 = vtanh.pop %v1040
  %v1048 = vmul.f32 %v1046, %v906
  %1050 = vrot.lane.b32.xlu0 %v1047, 64
  %v1051 = vpop.permute.xlu0 %1050
  %v1053 = vmul.f32 %v1046, %v1051
  %1055 = vrot.lane.b32.xlu0 %v1053, 32
  %v1056 = vpop.permute.xlu0 %1055
  %v1058 = vadd.f32 %v1048, %v1056
  %v1059 = vtanh.pop %v1058
  %1061 = vrot.lane.b32.xlu0 %v1059, 64
  %v1062 = vpop.permute.xlu0 %1061
  %v1064 = vmul.f32 %v1046, %v1062
  %1066 = vrot.lane.b32.xlu0 %v1064, 32
  %v1067 = vpop.permute.xlu0 %1066
  %1069 = vst.msk [vmem:[#allocation3 + $0x28] sm:$0xff] %vm223, %v1067
  %v1070 = vld [vmem:[#allocation2 + $0x30] sm:$0xff]
  %v1071 = vadd.f32 %v1070, %v986
  %v1072 = vxor.u32 %v1071, 2147483648
  %v1073 = vmul.f32 %v1072, 1.442695
  %v1074 = vpow.pop %v1073
  %v1075 = vadd.f32 %v1074, 1.0
  %v1076 = vrcp.pop %v1075
  %v1077 = vmul.f32 1.0, %v1076
  %v1078 = vtanh.pop %v1071
  %v1079 = vmul.f32 %v1077, %v937
  %1081 = vrot.lane.b32.xlu0 %v1078, 64
  %v1082 = vpop.permute.xlu0 %1081
  %v1084 = vmul.f32 %v1077, %v1082
  %1086 = vrot.lane.b32.xlu0 %v1084, 32
  %v1087 = vpop.permute.xlu0 %1086
  %v1089 = vadd.f32 %v1079, %v1087
  %v1090 = vtanh.pop %v1089
  %1092 = vrot.lane.b32.xlu0 %v1090, 64
  %v1093 = vpop.permute.xlu0 %1092
  %v1095 = vmul.f32 %v1077, %v1093
  %v1096 = vpack.c.bf16 %v1095, %v1095
  %1098 = vrot.lane.b32.xlu0 %v1096, 32
  %v1099 = vpop.permute.xlu0 %1098
  %v1101 = vsel %vm223, %v1099, 0
  %1103 = vmatprep.subr.bf16.mxu0 %v216
  %1104 = vmatpush1.bf16.msra.mxu0 %v215
  %1105 = vmatprep.subr.bf16.mxu0 %v218
  %1106 = vmatpush1.bf16.msra.mxu0 %v217
  %1107 = vmatprep.subr.bf16.mxu0 0
  %1108 = vmatpush1.bf16.msra.mxu0 0
  %1109 = vmatprep.subr.bf16.mxu0 0
  %1110 = vmatpush1.bf16.msra.mxu0 0
  %1111 = vmatprep.subr.bf16.mxu0 0
  %1112 = vmatpush1.bf16.msra.mxu0 0
  %1113 = vmatprep.subr.bf16.mxu0 0
  %1114 = vmatpush1.bf16.msra.mxu0 0
  %1115 = vmatprep.subr.bf16.mxu0 0
  %1116 = vmatpush1.bf16.msra.mxu0 0
  %1117 = vmatprep.subr.bf16.mxu0 0
  %1118 = vmatpush1.bf16.msra.mxu0 0
  %1119 = vmatprep.subr.bf16.mxu0 0
  %1120 = vmatpush1.bf16.msra.mxu0 0
  %1121 = vmatprep.subr.bf16.mxu0 0
  %1122 = vmatpush1.bf16.msra.mxu0 0
  %1123 = vmatprep.subr.bf16.mxu0 0
  %1124 = vmatpush1.bf16.msra.mxu0 0
  %1125 = vmatprep.subr.bf16.mxu0 0
  %1126 = vmatpush1.bf16.msra.mxu0 0
  %1127 = vmatprep.subr.bf16.mxu0 0
  %1128 = vmatpush1.bf16.msra.mxu0 0
  %1129 = vmatprep.subr.bf16.mxu0 0
  %1130 = vmatpush1.bf16.msra.mxu0 0
  %1131 = vmatprep.subr.bf16.mxu0 0
  %1132 = vmatpush1.bf16.msra.mxu0 0
  %1133 = vmatprep.subr.bf16.mxu0 0
  %1134 = vmatpush1.bf16.msra.mxu0 0
  %1135 = vmatprep.mubr.bf16.mxu0 0
  %1136 = vmatmul.mubr.bf16.gmra.mrb[0].mxu0 %v1101
  %v1137 = vpop.f32.mrb[0].mxu0
  %v1138 = vadd.f32 0.0, %v1137
  %v1139 = vpop.f32.mrb[0].mxu0
  %v1140 = vadd.f32 0.0, %v1139
  %v1141 = vpop.f32.mrb[0].mxu0
  %v1142 = vpop.f32.mrb[0].mxu0
  %1143 = vdwg.mxu0
  %v1144 = vadd.f32 %v1140, %v172
  %v1145 = vpack.c.bf16 %v1064, %v1064
  %1147 = vrot.lane.b32.xlu0 %v1145, 32
  %v1148 = vpop.permute.xlu0 %1147
  %v1150 = vsel %vm223, %v1148, 0
  %1152 = vmatprep.subr.bf16.mxu0 0
  %1153 = vmatpush1.bf16.msra.mxu0 %v385
  %1154 = vmatprep.subr.bf16.mxu0 0
  %1155 = vmatpush1.bf16.msra.mxu0 %v386
  %1156 = vmatprep.subr.bf16.mxu0 0
  %1157 = vmatpush1.bf16.msra.mxu0 0
  %1158 = vmatprep.subr.bf16.mxu0 0
  %1159 = vmatpush1.bf16.msra.mxu0 0
  %1160 = vmatprep.subr.bf16.mxu0 0
  %1161 = vmatpush1.bf16.msra.mxu0 0
  %1162 = vmatprep.subr.bf16.mxu0 0
  %1163 = vmatpush1.bf16.msra.mxu0 0
  %1164 = vmatprep.subr.bf16.mxu0 0
  %1165 = vmatpush1.bf16.msra.mxu0 0
  %1166 = vmatprep.subr.bf16.mxu0 0
  %1167 = vmatpush1.bf16.msra.mxu0 0
  %1168 = vmatprep.subr.bf16.mxu0 0
  %1169 = vmatpush1.bf16.msra.mxu0 0
  %1170 = vmatprep.subr.bf16.mxu0 0
  %1171 = vmatpush1.bf16.msra.mxu0 0
  %1172 = vmatprep.subr.bf16.mxu0 0
  %1173 = vmatpush1.bf16.msra.mxu0 0
  %1174 = vmatprep.subr.bf16.mxu0 0
  %1175 = vmatpush1.bf16.msra.mxu0 0
  %1176 = vmatprep.subr.bf16.mxu0 0
  %1177 = vmatpush1.bf16.msra.mxu0 0
  %1178 = vmatprep.subr.bf16.mxu0 0
  %1179 = vmatpush1.bf16.msra.mxu0 0
  %1180 = vmatprep.subr.bf16.mxu0 0
  %1181 = vmatpush1.bf16.msra.mxu0 0
  %1182 = vmatprep.subr.bf16.mxu0 0
  %1183 = vmatpush1.bf16.msra.mxu0 0
  %1184 = vmatprep.mubr.bf16.mxu0 0
  %1185 = vmatmul.mubr.bf16.gmra.mrb[0].mxu0 %v1150
  %v1186 = vpop.f32.mrb[0].mxu0
  %v1187 = vadd.f32 0.0, %v1186
  %v1188 = vpop.f32.mrb[0].mxu0
  %v1189 = vpop.f32.mrb[0].mxu0
  %v1190 = vpop.f32.mrb[0].mxu0
  %1191 = vdwg.mxu0
  %v1192 = vadd.f32 %v1144, %v1187
  %v1193 = vxor.u32 %v1192, 2147483648
  %v1194 = vmul.f32 %v1193, 1.442695
  %v1195 = vpow.pop %v1194
  %v1196 = vadd.f32 %v1195, 1.0
  %v1197 = vrcp.pop %v1196
  %v1198 = vmul.f32 1.0, %v1197
  %v1199 = vtanh.pop %v1192
  %v1200 = vmul.f32 %v1198, %v1058
  %1202 = vrot.lane.b32.xlu0 %v1199, 64
  %v1203 = vpop.permute.xlu0 %1202
  %v1205 = vmul.f32 %v1198, %v1203
  %1207 = vrot.lane.b32.xlu0 %v1205, 32
  %v1208 = vpop.permute.xlu0 %1207
  %v1210 = vadd.f32 %v1200, %v1208
  %v1211 = vtanh.pop %v1210
  %1213 = vrot.lane.b32.xlu0 %v1211, 64
  %v1214 = vpop.permute.xlu0 %1213
  %v1216 = vmul.f32 %v1198, %v1214
  %1218 = vrot.lane.b32.xlu0 %v1216, 32
  %v1219 = vpop.permute.xlu0 %1218
  %1221 = vst.msk [vmem:[#allocation3 + $0x30] sm:$0xff] %vm223, %v1219
  %v1222 = vld [vmem:[#allocation2 + $0x38] sm:$0xff]
  %v1223 = vadd.f32 %v1222, %v1138
  %v1224 = vxor.u32 %v1223, 2147483648
  %v1225 = vmul.f32 %v1224, 1.442695
  %v1226 = vpow.pop %v1225
  %v1227 = vadd.f32 %v1226, 1.0
  %v1228 = vrcp.pop %v1227
  %v1229 = vmul.f32 1.0, %v1228
  %v1230 = vtanh.pop %v1223
  %v1231 = vmul.f32 %v1229, %v1089
  %1233 = vrot.lane.b32.xlu0 %v1230, 64
  %v1234 = vpop.permute.xlu0 %1233
  %v1236 = vmul.f32 %v1229, %v1234
  %1238 = vrot.lane.b32.xlu0 %v1236, 32
  %v1239 = vpop.permute.xlu0 %1238
  %v1241 = vadd.f32 %v1231, %v1239
  %v1242 = vtanh.pop %v1241
  %1244 = vrot.lane.b32.xlu0 %v1242, 64
  %v1245 = vpop.permute.xlu0 %1244
  %v1247 = vmul.f32 %v1229, %v1245
  %v1248 = vpack.c.bf16 %v1247, %v1247
  %1250 = vrot.lane.b32.xlu0 %v1248, 32
  %v1251 = vpop.permute.xlu0 %1250
  %v1253 = vsel %vm223, %v1251, 0
  %1255 = vmatprep.subr.bf16.mxu0 %v216
  %1256 = vmatpush1.bf16.msra.mxu0 %v215
  %1257 = vmatprep.subr.bf16.mxu0 %v218
  %1258 = vmatpush1.bf16.msra.mxu0 %v217
  %1259 = vmatprep.subr.bf16.mxu0 0
  %1260 = vmatpush1.bf16.msra.mxu0 0
  %1261 = vmatprep.subr.bf16.mxu0 0
  %1262 = vmatpush1.bf16.msra.mxu0 0
  %1263 = vmatprep.subr.bf16.mxu0 0
  %1264 = vmatpush1.bf16.msra.mxu0 0
  %1265 = vmatprep.subr.bf16.mxu0 0
  %1266 = vmatpush1.bf16.msra.mxu0 0
  %1267 = vmatprep.subr.bf16.mxu0 0
  %1268 = vmatpush1.bf16.msra.mxu0 0
  %1269 = vmatprep.subr.bf16.mxu0 0
  %1270 = vmatpush1.bf16.msra.mxu0 0
  %1271 = vmatprep.subr.bf16.mxu0 0
  %1272 = vmatpush1.bf16.msra.mxu0 0
  %1273 = vmatprep.subr.bf16.mxu0 0
  %1274 = vmatpush1.bf16.msra.mxu0 0
  %1275 = vmatprep.subr.bf16.mxu0 0
  %1276 = vmatpush1.bf16.msra.mxu0 0
  %1277 = vmatprep.subr.bf16.mxu0 0
  %1278 = vmatpush1.bf16.msra.mxu0 0
  %1279 = vmatprep.subr.bf16.mxu0 0
  %1280 = vmatpush1.bf16.msra.mxu0 0
  %1281 = vmatprep.subr.bf16.mxu0 0
  %1282 = vmatpush1.bf16.msra.mxu0 0
  %1283 = vmatprep.subr.bf16.mxu0 0
  %1284 = vmatpush1.bf16.msra.mxu0 0
  %1285 = vmatprep.subr.bf16.mxu0 0
  %1286 = vmatpush1.bf16.msra.mxu0 0
  %1287 = vmatprep.mubr.bf16.mxu0 0
  %1288 = vmatmul.mubr.bf16.gmra.mrb[0].mxu0 %v1253
  %v1289 = vpop.f32.mrb[0].mxu0
  %v1290 = vpop.f32.mrb[0].mxu0
  %v1291 = vadd.f32 0.0, %v1290
  %v1292 = vpop.f32.mrb[0].mxu0
  %v1293 = vpop.f32.mrb[0].mxu0
  %1294 = vdwg.mxu0
  %v1295 = vadd.f32 %v1291, %v172
  %v1296 = vpack.c.bf16 %v1216, %v1216
  %1298 = vrot.lane.b32.xlu0 %v1296, 32
  %v1299 = vpop.permute.xlu0 %1298
  %v1301 = vsel %vm223, %v1299, 0
  %1303 = vmatprep.subr.bf16.mxu0 0
  %1304 = vmatpush1.bf16.msra.mxu0 %v385
  %1305 = vmatprep.subr.bf16.mxu0 0
  %1306 = vmatpush1.bf16.msra.mxu0 %v386
  %1307 = vmatprep.subr.bf16.mxu0 0
  %1308 = vmatpush1.bf16.msra.mxu0 0
  %1309 = vmatprep.subr.bf16.mxu0 0
  %1310 = vmatpush1.bf16.msra.mxu0 0
  %1311 = vmatprep.subr.bf16.mxu0 0
  %1312 = vmatpush1.bf16.msra.mxu0 0
  %1313 = vmatprep.subr.bf16.mxu0 0
  %1314 = vmatpush1.bf16.msra.mxu0 0
  %1315 = vmatprep.subr.bf16.mxu0 0
  %1316 = vmatpush1.bf16.msra.mxu0 0
  %1317 = vmatprep.subr.bf16.mxu0 0
  %1318 = vmatpush1.bf16.msra.mxu0 0
  %1319 = vmatprep.subr.bf16.mxu0 0
  %1320 = vmatpush1.bf16.msra.mxu0 0
  %1321 = vmatprep.subr.bf16.mxu0 0
  %1322 = vmatpush1.bf16.msra.mxu0 0
  %1323 = vmatprep.subr.bf16.mxu0 0
  %1324 = vmatpush1.bf16.msra.mxu0 0
  %1325 = vmatprep.subr.bf16.mxu0 0
  %1326 = vmatpush1.bf16.msra.mxu0 0
  %1327 = vmatprep.subr.bf16.mxu0 0
  %1328 = vmatpush1.bf16.msra.mxu0 0
  %1329 = vmatprep.subr.bf16.mxu0 0
  %1330 = vmatpush1.bf16.msra.mxu0 0
  %1331 = vmatprep.subr.bf16.mxu0 0
  %1332 = vmatpush1.bf16.msra.mxu0 0
  %1333 = vmatprep.subr.bf16.mxu0 0
  %1334 = vmatpush1.bf16.msra.mxu0 0
  %1335 = vmatprep.mubr.bf16.mxu0 0
  %1336 = vmatmul.mubr.bf16.gmra.mrb[0].mxu0 %v1301
  %v1337 = vpop.f32.mrb[0].mxu0
  %v1338 = vadd.f32 0.0, %v1337
  %v1339 = vpop.f32.mrb[0].mxu0
  %v1340 = vpop.f32.mrb[0].mxu0
  %v1341 = vpop.f32.mrb[0].mxu0
  %1342 = vdwg.mxu0
  %v1343 = vadd.f32 %v1295, %v1338
  %v1344 = vxor.u32 %v1343, 2147483648
  %v1345 = vmul.f32 %v1344, 1.442695
  %v1346 = vpow.pop %v1345
  %v1347 = vadd.f32 %v1346, 1.0
  %v1348 = vrcp.pop %v1347
  %v1349 = vmul.f32 1.0, %v1348
  %v1350 = vtanh.pop %v1343
  %v1351 = vmul.f32 %v1349, %v1210
  %1353 = vrot.lane.b32.xlu0 %v1350, 64
  %v1354 = vpop.permute.xlu0 %1353
  %v1356 = vmul.f32 %v1349, %v1354
  %1358 = vrot.lane.b32.xlu0 %v1356, 32
  %v1359 = vpop.permute.xlu0 %1358
  %v1361 = vadd.f32 %v1351, %v1359
  %v1362 = vtanh.pop %v1361
  %1364 = vrot.lane.b32.xlu0 %v1362, 64
  %v1365 = vpop.permute.xlu0 %1364
  %v1367 = vmul.f32 %v1349, %v1365
  %1369 = vrot.lane.b32.xlu0 %v1367, 32
  %v1370 = vpop.permute.xlu0 %1369
  %1372 = vst.msk [vmem:[#allocation3 + $0x38] sm:$0xff] %vm223, %v1370
  %v1373 = vld [vmem:[#allocation3] sm:$0xff]
  %v1374 = vld [vmem:[#allocation3 + $0x8] sm:$0xff]
  %v1375 = vld [vmem:[#allocation3 + $0x10] sm:$0xff]
  %v1376 = vld [vmem:[#allocation3 + $0x18] sm:$0xff]
  %v1377 = vld [vmem:[#allocation3 + $0x20] sm:$0xff]
  %v1378 = vld [vmem:[#allocation3 + $0x28] sm:$0xff]
  %v1379 = vld [vmem:[#allocation3 + $0x30] sm:$0xff]
  %v1380 = vld [vmem:[#allocation3 + $0x38] sm:$0xff]
  %v1381 = vpack.c.bf16 %v1374, %v1373
  %v1382 = vpack.c.bf16 %v1376, %v1375
  %v1383 = vpack.c.bf16 %v1378, %v1377
  %v1384 = vpack.c.bf16 %v1380, %v1379
  %v1385 = vld [vmem:[%s6] sm:$0xf]
  %v1386 = vld [vmem:[%s6 + $0x4] sm:$0xf]
  %v1387 = vld [vmem:[%s6 + $0x8] sm:$0xf]
  %v1388 = vld [vmem:[%s6 + $0xc] sm:$0xf]
  %v1389 = vld [vmem:[%s7] sm:$0x1]
  %v1391 = vlaneseq
  %v1392 = vshrl.u32 %v1391, 7
  %v1393 = vsub.s32 0, %v1392
  %v1394 = vrot.slane %v1389, %v1393
  %v1400 = vunpack.c.l.b16 %v1385
  %v1401 = vunpack.c.l.b16 %v1386
  %v1402 = vunpack.c.l.b16 %v1387
  %v1403 = vunpack.c.l.b16 %v1388
  %v1404 = vpack.c.b16 %v1401, %v1400
  %v1405 = vpack.c.b16 %v1403, %v1402
  %v1409 = vsel %vm223, %v1381, 0
  %v1412 = vsel %vm223, %v1382, 0
  %v1415 = vsel %vm223, %v1383, 0
  %v1418 = vsel %vm223, %v1384, 0
  %1420 = vmatprep.subr.bf16.mxu0 0
  %1421 = vmatpush1.bf16.msra.mxu0 %v1404
  %1422 = vmatprep.subr.bf16.mxu0 0
  %1423 = vmatpush1.bf16.msra.mxu0 %v1405
  %1424 = vmatprep.subr.bf16.mxu0 0
  %1425 = vmatpush1.bf16.msra.mxu0 0
  %1426 = vmatprep.subr.bf16.mxu0 0
  %1427 = vmatpush1.bf16.msra.mxu0 0
  %1428 = vmatprep.subr.bf16.mxu0 0
  %1429 = vmatpush1.bf16.msra.mxu0 0
  %1430 = vmatprep.subr.bf16.mxu0 0
  %1431 = vmatpush1.bf16.msra.mxu0 0
  %1432 = vmatprep.subr.bf16.mxu0 0
  %1433 = vmatpush1.bf16.msra.mxu0 0
  %1434 = vmatprep.subr.bf16.mxu0 0
  %1435 = vmatpush1.bf16.msra.mxu0 0
  %1436 = vmatprep.subr.bf16.mxu0 0
  %1437 = vmatpush1.bf16.msra.mxu0 0
  %1438 = vmatprep.subr.bf16.mxu0 0
  %1439 = vmatpush1.bf16.msra.mxu0 0
  %1440 = vmatprep.subr.bf16.mxu0 0
  %1441 = vmatpush1.bf16.msra.mxu0 0
  %1442 = vmatprep.subr.bf16.mxu0 0
  %1443 = vmatpush1.bf16.msra.mxu0 0
  %1444 = vmatprep.subr.bf16.mxu0 0
  %1445 = vmatpush1.bf16.msra.mxu0 0
  %1446 = vmatprep.subr.bf16.mxu0 0
  %1447 = vmatpush1.bf16.msra.mxu0 0
  %1448 = vmatprep.subr.bf16.mxu0 0
  %1449 = vmatpush1.bf16.msra.mxu0 0
  %1450 = vmatprep.subr.bf16.mxu0 0
  %1451 = vmatpush1.bf16.msra.mxu0 0
  %1452 = vmatprep.mubr.bf16.mxu0 0
  %1453 = vmatmul.mubr.bf16.gmra.mrb[0].mxu0 %v1409
  %v1454 = vpop.f32.mrb[0].mxu0
  %v1455 = vadd.f32 %v1394, %v1454
  %v1456 = vpop.f32.mrb[0].mxu0
  %v1457 = vpop.f32.mrb[0].mxu0
  %v1458 = vadd.f32 %v1394, %v1457
  %v1459 = vpop.f32.mrb[0].mxu0
  %1460 = vmatprep.mubr.bf16.mxu0 0
  %1461 = vmatmul.mubr.bf16.gmra.mrb[0].mxu0 %v1412
  %v1462 = vpop.f32.mrb[0].mxu0
  %v1463 = vadd.f32 %v1394, %v1462
  %v1464 = vpop.f32.mrb[0].mxu0
  %v1465 = vpop.f32.mrb[0].mxu0
  %v1466 = vadd.f32 %v1394, %v1465
  %v1467 = vpop.f32.mrb[0].mxu0
  %1468 = vmatprep.mubr.bf16.mxu0 0
  %1469 = vmatmul.mubr.bf16.gmra.mrb[0].mxu0 %v1415
  %v1470 = vpop.f32.mrb[0].mxu0
  %v1471 = vadd.f32 %v1394, %v1470
  %v1472 = vpop.f32.mrb[0].mxu0
  %v1473 = vpop.f32.mrb[0].mxu0
  %v1474 = vadd.f32 %v1394, %v1473
  %v1475 = vpop.f32.mrb[0].mxu0
  %1476 = vmatprep.mubr.bf16.mxu0 0
  %1477 = vmatmul.mubr.bf16.gmra.mrb[0].mxu0 %v1418
  %v1478 = vpop.f32.mrb[0].mxu0
  %v1479 = vadd.f32 %v1394, %v1478
  %v1480 = vpop.f32.mrb[0].mxu0
  %v1481 = vpop.f32.mrb[0].mxu0
  %v1482 = vadd.f32 %v1394, %v1481
  %v1483 = vpop.f32.mrb[0].mxu0
  %1484 = vdwg.mxu0
  %1485 = vmax.xlane.f32.xlu0 %v1455
  %v1486 = vpop.xlane.xlu0 %1485
  %1487 = vmax.xlane.f32.xlu0 %v1458
  %v1488 = vpop.xlane.xlu0 %1487
  %1489 = vmax.xlane.f32.xlu0 %v1463
  %v1490 = vpop.xlane.xlu0 %1489
  %1491 = vmax.xlane.f32.xlu0 %v1466
  %v1492 = vpop.xlane.xlu0 %1491
  %1493 = vmax.xlane.f32.xlu0 %v1471
  %v1494 = vpop.xlane.xlu0 %1493
  %1495 = vmax.xlane.f32.xlu0 %v1474
  %v1496 = vpop.xlane.xlu0 %1495
  %1497 = vmax.xlane.f32.xlu0 %v1479
  %v1498 = vpop.xlane.xlu0 %1497
  %1499 = vmax.xlane.f32.xlu0 %v1482
  %v1500 = vpop.xlane.xlu0 %1499
  %v1501 = vsub.f32 %v1455, %v1486
  %v1502 = vsub.f32 %v1458, %v1488
  %v1503 = vsub.f32 %v1463, %v1490
  %v1504 = vsub.f32 %v1466, %v1492
  %v1505 = vsub.f32 %v1471, %v1494
  %v1506 = vsub.f32 %v1474, %v1496
  %v1507 = vsub.f32 %v1479, %v1498
  %v1508 = vsub.f32 %v1482, %v1500
  %v1509 = vmul.f32 %v1501, 1.442695
  %v1510 = vpow.pop %v1509
  %v1511 = vmul.f32 %v1502, 1.442695
  %v1512 = vpow.pop %v1511
  %v1513 = vmul.f32 %v1503, 1.442695
  %v1514 = vpow.pop %v1513
  %v1515 = vmul.f32 %v1504, 1.442695
  %v1516 = vpow.pop %v1515
  %v1517 = vmul.f32 %v1505, 1.442695
  %v1518 = vpow.pop %v1517
  %v1519 = vmul.f32 %v1506, 1.442695
  %v1520 = vpow.pop %v1519
  %v1521 = vmul.f32 %v1507, 1.442695
  %v1522 = vpow.pop %v1521
  %v1523 = vmul.f32 %v1508, 1.442695
  %v1524 = vpow.pop %v1523
  %1525 = vadd.xlane.f32.xlu0 %v1510
  %v1526 = vpop.xlane.xlu0 %1525
  %1527 = vadd.xlane.f32.xlu0 %v1512
  %v1528 = vpop.xlane.xlu0 %1527
  %1529 = vadd.xlane.f32.xlu0 %v1514
  %v1530 = vpop.xlane.xlu0 %1529
  %1531 = vadd.xlane.f32.xlu0 %v1516
  %v1532 = vpop.xlane.xlu0 %1531
  %1533 = vadd.xlane.f32.xlu0 %v1518
  %v1534 = vpop.xlane.xlu0 %1533
  %1535 = vadd.xlane.f32.xlu0 %v1520
  %v1536 = vpop.xlane.xlu0 %1535
  %1537 = vadd.xlane.f32.xlu0 %v1522
  %v1538 = vpop.xlane.xlu0 %1537
  %1539 = vadd.xlane.f32.xlu0 %v1524
  %v1540 = vpop.xlane.xlu0 %1539
  %v1541 = vlog2.pop %v1526
  %v1542 = vmul.f32 %v1541, 0.6931472
  %v1543 = vlog2.pop %v1528
  %v1544 = vmul.f32 %v1543, 0.6931472
  %v1545 = vlog2.pop %v1530
  %v1546 = vmul.f32 %v1545, 0.6931472
  %v1547 = vlog2.pop %v1532
  %v1548 = vmul.f32 %v1547, 0.6931472
  %v1549 = vlog2.pop %v1534
  %v1550 = vmul.f32 %v1549, 0.6931472
  %v1551 = vlog2.pop %v1536
  %v1552 = vmul.f32 %v1551, 0.6931472
  %v1553 = vlog2.pop %v1538
  %v1554 = vmul.f32 %v1553, 0.6931472
  %v1555 = vlog2.pop %v1540
  %v1556 = vmul.f32 %v1555, 0.6931472
  %v1557 = vadd.f32 %v1486, %v1542
  %v1558 = vadd.f32 %v1488, %v1544
  %v1559 = vadd.f32 %v1490, %v1546
  %v1560 = vadd.f32 %v1492, %v1548
  %v1561 = vadd.f32 %v1494, %v1550
  %v1562 = vadd.f32 %v1496, %v1552
  %v1563 = vadd.f32 %v1498, %v1554
  %v1564 = vadd.f32 %v1500, %v1556
  %v1565 = vsub.f32 %v1455, %v1557
  %v1566 = vsub.f32 %v1458, %v1558
  %v1567 = vsub.f32 %v1463, %v1559
  %v1568 = vsub.f32 %v1466, %v1560
  %v1569 = vsub.f32 %v1471, %v1561
  %v1570 = vsub.f32 %v1474, %v1562
  %v1571 = vsub.f32 %v1479, %v1563
  %v1572 = vsub.f32 %v1482, %v1564
  %v1573 = vlaneseq
  %v1574 = vand.u32 %v1573, 127
  %v1575 = vlaneseq
  %v1576 = vshrl.u32 %v1575, 7
  %vm1577 = vcmp.lt.s32.totalorder %v1574, 0
  %v1578 = vsub.s32 0, %v1574
  %v1579 = vsel %vm1577, %v1578, %v1574
  %v1580 = vshrl.u32 %v1579, 3
  %v1581 = vand.u32 %v1579, 7
  %v1582 = vsub.s32 0, %v1581
  %v1583 = vsel %vm1577, %v1582, %v1581
  %vm1584 = vcmp.ne.s32.totalorder %v1583, 0
  %vm1585 = vcmp.lt.s32.totalorder %v1583, 0
  %vm1586 = vmand %vm1585, %vm1584
  %v1587 = vadd.s32 %v1583, 8
  %v1588 = vsel %vm1586, %v1587, %v1583
  %vm1589 = vcmp.eq.s32.totalorder %v1588, %v1576
  %v1590 = vsel %vm1589, 0.125, 0.0
  %vm1591 = vcmask 523264
  %v1593 = vsel %vm1591, %v1590, 0
  %1595 = vmatprep.subr.mxu0 0.0
  %1596 = vmatpush1.msra.mxu0 %v1565
  %1597 = vmatprep.subr.mxu0 0.0
  %1598 = vmatpush1.msra.mxu0 %v1566
  %1599 = vmatprep.subr.mxu0 0.0
  %1600 = vmatpush1.msra.mxu0 %v1567
  %1601 = vmatprep.subr.mxu0 0.0
  %1602 = vmatpush1.msra.mxu0 %v1568
  %1603 = vmatprep.subr.mxu0 0.0
  %1604 = vmatpush1.msra.mxu0 %v1569
  %1605 = vmatprep.subr.mxu0 0.0
  %1606 = vmatpush1.msra.mxu0 %v1570
  %1607 = vmatprep.subr.mxu0 0.0
  %1608 = vmatpush1.msra.mxu0 %v1571
  %1609 = vmatprep.subr.mxu0 0.0
  %1610 = vmatpush1.msra.mxu0 %v1572
  %1611 = vmatprep.subr.mxu0 0.0
  %1612 = vmatpush1.msra.mxu0 0.0
  %1613 = vmatprep.subr.mxu0 0.0
  %1614 = vmatpush1.msra.mxu0 0.0
  %1615 = vmatprep.subr.mxu0 0.0
  %1616 = vmatpush1.msra.mxu0 0.0
  %1617 = vmatprep.subr.mxu0 0.0
  %1618 = vmatpush1.msra.mxu0 0.0
  %1619 = vmatprep.subr.mxu0 0.0
  %1620 = vmatpush1.msra.mxu0 0.0
  %1621 = vmatprep.subr.mxu0 0.0
  %1622 = vmatpush1.msra.mxu0 0.0
  %1623 = vmatprep.subr.mxu0 0.0
  %1624 = vmatpush1.msra.mxu0 0.0
  %1625 = vmatprep.subr.mxu0 0.0
  %1626 = vmatpush1.msra.mxu0 0.0
  %1627 = vmatprep.subr.mxu0 0.0
  %1628 = vmatpush1.msra.mxu0 0.0
  %1629 = vmatprep.subr.mxu0 0.0
  %1630 = vmatpush1.msra.mxu0 0.0
  %1631 = vmatprep.subr.mxu0 0.0
  %1632 = vmatpush1.msra.mxu0 0.0
  %1633 = vmatprep.subr.mxu0 0.0
  %1634 = vmatpush1.msra.mxu0 0.0
  %1635 = vmatprep.subr.mxu0 0.0
  %1636 = vmatpush1.msra.mxu0 0.0
  %1637 = vmatprep.subr.mxu0 0.0
  %1638 = vmatpush1.msra.mxu0 0.0
  %1639 = vmatprep.subr.mxu0 0.0
  %1640 = vmatpush1.msra.mxu0 0.0
  %1641 = vmatprep.subr.mxu0 0.0
  %1642 = vmatpush1.msra.mxu0 0.0
  %1643 = vmatprep.subr.mxu0 0.0
  %1644 = vmatpush1.msra.mxu0 0.0
  %1645 = vmatprep.subr.mxu0 0.0
  %1646 = vmatpush1.msra.mxu0 0.0
  %1647 = vmatprep.subr.mxu0 0.0
  %1648 = vmatpush1.msra.mxu0 0.0
  %1649 = vmatprep.subr.mxu0 0.0
  %1650 = vmatpush1.msra.mxu0 0.0
  %1651 = vmatprep.subr.mxu0 0.0
  %1652 = vmatpush1.msra.mxu0 0.0
  %1653 = vmatprep.subr.mxu0 0.0
  %1654 = vmatpush1.msra.mxu0 0.0
  %1655 = vmatprep.subr.mxu0 0.0
  %1656 = vmatpush1.msra.mxu0 0.0
  %1657 = vmatprep.subr.mxu0 0.0
  %1658 = vmatpush1.msra.mxu0 0.0
  %1659 = vmatprep.mubr.f32.mxu0 0.0
  %1660 = vmatmul.mubr.f32.gmra.mrb[0].mxu0 %v1593
  %v1661 = vpop.f32.mrb[0].mxu0
  %v1662 = vadd.f32 0.0, %v1661
  %v1663 = vpop.f32.mrb[0].mxu0
  %1664 = vdwg.mxu0
  %1665 = vst [vmem:[%s8] sm:$0xff] %v1662
  // Predicated region
  $region34: #{lstm_keyword_spotter.1} parent=0 // pred_check
    _
  $region35: #{lstm_keyword_spotter.1} parent=0 // pred_check_branch
    %1667 = sbr.rel (0) target = $region37
  $region36: #{lstm_keyword_spotter.1} parent=0 // pred_region
    _
  $region37: #{lstm_keyword_spotter.1} parent=0 // pred_fallthru
    _
  // Predicated region
  $region38: #{lstm_keyword_spotter.1} parent=0 // pred_check
    _
  $region39: #{lstm_keyword_spotter.1} parent=0 // pred_check_branch
    %1669 = sbr.rel (0) target = $region41
  $region40: #{lstm_keyword_spotter.1} parent=0 // pred_region
    _
  $region41: #{lstm_keyword_spotter.1} parent=0 // pred_fallthru
    _

</llo_original>
